<compile_context>
chip_gen: v6e
topology: v6e:2x2x1
jax: 0.10.0
libtpu: 0.0.40
codegen_flags: <defaults>
</compile_context>

<pallas_src>
import jax
import jax.numpy as jnp
from jax.experimental import pallas as pl
from jax.experimental.pallas import tpu as pltpu

PATCH = 16                      # ViT-B/16 patch size
WIDTH = 128                     # encoder width (small stand-in for ViT-B/16's 768)
EMBED = 512                     # CLIP joint embedding dim
VOCAB = 64                      # toy tokenizer vocab
CTX = 8                         # toy context length
CHANS = 3
KPATCH = CHANS * PATCH * PATCH  # 768 = flattened (c, i, j) patch vector


# ---------------------------------------------------------------------------
# Single fused kernel: image path + text path + CLIP similarity head
# ---------------------------------------------------------------------------
def _make_fused_kernel(n_prompts: int, ctx: int):
    def kernel(ids_ref,                  # SMEM [N, CTX] int32   (scalar prefetch)
               pp_ref,                   # VMEM [TB, KPATCH] bf16 (pooled patches)
               wp_ref, bp_ref,           # patch embed  [KPATCH, WIDTH] bf16 / [1, WIDTH] f32
               wi_ref, bi_ref,           # image proj   [WIDTH, EMBED] bf16 / [1, EMBED] f32
               tok_ref,                  # token table  [VOCAB, WIDTH] f32 (32 KB, whole in VMEM)
               wt_ref, bt_ref,           # text proj    [WIDTH, EMBED] bf16 / [1, EMBED] f32
               scale_ref,                # SMEM [1] f32  (exp(logit_scale))
               li_ref):                  # VMEM [TB, N] f32  (logits_per_image tile)
        # ------------------ image path (per frame tile, MXU) ------------------
        pe = jnp.dot(pp_ref[...], wp_ref[...],
                     preferred_element_type=jnp.float32) + bp_ref[...]      # [TB, WIDTH] f32
        img = jnp.dot(pe.astype(jnp.bfloat16), wi_ref[...],
                      preferred_element_type=jnp.float32) + bi_ref[...]     # [TB, EMBED] f32
        # L2 normalize in f32 (VPU + EUP), then fold logit_scale in once.
        img = img * jax.lax.rsqrt(jnp.sum(img * img, axis=-1, keepdims=True) + 1e-12)
        img = img * scale_ref[0]

        # ------------------ text path (tiny; recomputed per tile — trivial) ----
        # In-kernel gather: SMEM-held token ids index rows of the VMEM table.
        rows = []
        for n in range(n_prompts):
            acc = jnp.zeros((1, WIDTH), jnp.float32)
            for t in range(ctx):
                acc = acc + tok_ref[pl.ds(ids_ref[n, t], 1), :]
            rows.append(acc)
        pooled_txt = jnp.concatenate(rows, axis=0) * (1.0 / ctx)            # [N, WIDTH] f32
        txt = jnp.dot(pooled_txt.astype(jnp.bfloat16), wt_ref[...],
                      preferred_element_type=jnp.float32) + bt_ref[...]     # [N, EMBED] f32
        txt = txt * jax.lax.rsqrt(jnp.sum(txt * txt, axis=-1, keepdims=True) + 1e-12)

        # ------------------ similarity head: single MXU dot --------------------
        li = jax.lax.dot_general(img.astype(jnp.bfloat16), txt.astype(jnp.bfloat16),
                                 (((1,), (1,)), ((), ())),
                                 preferred_element_type=jnp.float32)        # [TB, N]
        li_ref[...] = li
    return kernel


def clip_similarity(token_ids, pooled_patches, params, scale):
    """pooled_patches: [B, KPATCH] bf16; token_ids: [N, CTX] int32; scale: [1] f32."""
    B = pooled_patches.shape[0]
    N, ctx = token_ids.shape

    # Tile over frames: block == full batch when small (always layout-legal),
    # 128-row tiles (multiple of 8 sublanes) when large so the grid pipelines
    # and the "parallel" axis shards across v7x's two TensorCores.
    TB = B if B <= 128 else 128
    nb = pl.cdiv(B, TB)

    kernel = _make_fused_kernel(N, ctx)

    grid_spec = pltpu.PrefetchScalarGridSpec(
        num_scalar_prefetch=1,            # token_ids -> SMEM, visible to index_maps & kernel
        grid=(nb,),
        in_specs=[
            pl.BlockSpec((TB, KPATCH), lambda i, ids: (i, 0)),     # pooled patches (tiled)
            pl.BlockSpec((KPATCH, WIDTH), lambda i, ids: (0, 0)),  # w_patch
            pl.BlockSpec((1, WIDTH), lambda i, ids: (0, 0)),       # b_patch
            pl.BlockSpec((WIDTH, EMBED), lambda i, ids: (0, 0)),   # w_img_proj
            pl.BlockSpec((1, EMBED), lambda i, ids: (0, 0)),       # b_img_proj
            pl.BlockSpec((VOCAB, WIDTH), lambda i, ids: (0, 0)),   # tok_embed
            pl.BlockSpec((WIDTH, EMBED), lambda i, ids: (0, 0)),   # w_txt_proj
            pl.BlockSpec((1, EMBED), lambda i, ids: (0, 0)),       # b_txt_proj
            pl.BlockSpec(memory_space=pltpu.MemorySpace.SMEM),     # logit scale scalar
        ],
        out_specs=pl.BlockSpec((TB, N), lambda i, ids: (i, 0)),
    )

    logits_per_image = pl.pallas_call(
        kernel,
        grid_spec=grid_spec,
        out_shape=jax.ShapeDtypeStruct((B, N), jnp.float32),
        compiler_params=pltpu.CompilerParams(
            dimension_semantics=("parallel",),   # megacore sharding on v7x
        ),
    )(token_ids, pooled_patches,
      params["w_patch"], params["b_patch"],
      params["w_img_proj"], params["b_img_proj"],
      params["tok_embed"],
      params["w_txt_proj"], params["b_txt_proj"],
      scale)

    # CLIP semantics: logits_per_text is exactly logits_per_image.T. A tiny
    # wrapper-side transpose replaces the second MXU matmul of the old version.
    logits_per_text = logits_per_image.T
    return logits_per_image, logits_per_text


# ---------------------------------------------------------------------------
# Forward
# ---------------------------------------------------------------------------
def hybrid_model_forward(frames, token_ids, params):
    """frames: [B, 3, H, W] float32 (NCHW), token_ids: [N, CTX] int32."""
    B, C, H, Wimg = frames.shape
    assert C == CHANS and H % PATCH == 0 and Wimg % PATCH == 0
    Hp, Wp = H // PATCH, Wimg // PATCH

    # Pool-first rewrite: mean over patches commutes with the linear patch
    # embedding, so average the raw patches before the matmul. This is a single
    # XLA reduce that reads the frames exactly once (no im2col transpose copy in
    # HBM) and emits a tiny [B, 768] tensor, cast to bf16 for the MXU.
    pooled = frames.reshape(B, C, Hp, PATCH, Wp, PATCH).mean(axis=(2, 4))
    pooled = pooled.reshape(B, C * PATCH * PATCH).astype(jnp.bfloat16)

    scale = jnp.exp(params["logit_scale"]).reshape(1).astype(jnp.float32)
    return clip_similarity(token_ids, pooled, params, scale)


def make_params(key):
    k = jax.random.split(key, 4)
    return {
        # Frozen-inference matmul weights kept in bf16 (MXU-native); biases,
        # embedding table and logit scale stay f32.
        "w_patch": (0.02 * jax.random.normal(k[0], (KPATCH, WIDTH))).astype(jnp.bfloat16),
        "b_patch": jnp.zeros((1, WIDTH), jnp.float32),
        "w_img_proj": (0.02 * jax.random.normal(k[1], (WIDTH, EMBED))).astype(jnp.bfloat16),
        "b_img_proj": jnp.zeros((1, EMBED), jnp.float32),
        "tok_embed": 0.02 * jax.random.normal(k[2], (VOCAB, WIDTH), jnp.float32),
        "w_txt_proj": (0.02 * jax.random.normal(k[3], (WIDTH, EMBED))).astype(jnp.bfloat16),
        "b_txt_proj": jnp.zeros((1, EMBED), jnp.float32),
        "logit_scale": jnp.float32(jnp.log(1.0 / 0.07)),   # CLIP init value
    }


if __name__ == "__main__":
    key = jax.random.PRNGKey(0)
    kf, kt, kp = jax.random.split(key, 3)

    # small shapes: 2 frames of 3x32x32 (4 patches each), 4 tokenized prompts
    frames = jax.random.normal(kf, (2, 3, 32, 32), jnp.float32)
    token_ids = jax.random.randint(kt, (4, CTX), 0, VOCAB, dtype=jnp.int32)
    params = make_params(kp)

    logits_per_image, logits_per_text = jax.jit(hybrid_model_forward)(
        frames, token_ids, params)
    jax.block_until_ready((logits_per_image, logits_per_text))

    assert logits_per_image.shape == (2, 4)
    assert logits_per_text.shape == (4, 2)
    assert bool(jnp.all(jnp.isfinite(logits_per_image)))
    assert bool(jnp.allclose(logits_per_text, logits_per_image.T))
    print("KERNEL_OK")
</pallas_src>

<mosaic_0001>
module attributes {stable_mosaic.version = 11 : i64} {
  func.func @kernel(%arg0: i32, %arg1: memref<4x8xi32, #tpu.memory_space<smem>>, %arg2: memref<2x768xbf16, #tpu.memory_space<vmem>>, %arg3: memref<768x128xbf16, #tpu.memory_space<vmem>>, %arg4: memref<1x128xf32, #tpu.memory_space<vmem>>, %arg5: memref<128x512xbf16, #tpu.memory_space<vmem>>, %arg6: memref<1x512xf32, #tpu.memory_space<vmem>>, %arg7: memref<64x128xf32, #tpu.memory_space<vmem>>, %arg8: memref<128x512xbf16, #tpu.memory_space<vmem>>, %arg9: memref<1x512xf32, #tpu.memory_space<vmem>>, %arg10: memref<1xf32, #tpu.memory_space<smem>>, %arg11: memref<2x4xf32, #tpu.memory_space<vmem>>) attributes {dimension_semantics = [#tpu.dimension_semantics<parallel>], iteration_bounds = array<i64: 1>, scalar_prefetch = 1 : i64, scratch_operands = 0 : i64, tpu.core_type = #tpu.core_type<tc>, window_params = [{transform_indices = @transform_0, window_bounds = array<i64: 2, 768>}, {pipeline_mode = #tpu.pipeline_mode<synchronous>, transform_indices = @transform_1, window_bounds = array<i64: 768, 128>}, {pipeline_mode = #tpu.pipeline_mode<synchronous>, transform_indices = @transform_2, window_bounds = array<i64: 1, 128>}, {pipeline_mode = #tpu.pipeline_mode<synchronous>, transform_indices = @transform_3, window_bounds = array<i64: 128, 512>}, {pipeline_mode = #tpu.pipeline_mode<synchronous>, transform_indices = @transform_4, window_bounds = array<i64: 1, 512>}, {pipeline_mode = #tpu.pipeline_mode<synchronous>, transform_indices = @transform_5, window_bounds = array<i64: 64, 128>}, {pipeline_mode = #tpu.pipeline_mode<synchronous>, transform_indices = @transform_6, window_bounds = array<i64: 128, 512>}, {pipeline_mode = #tpu.pipeline_mode<synchronous>, transform_indices = @transform_7, window_bounds = array<i64: 1, 512>}, {transform_indices = @transform_8, window_bounds = array<i64: 1>}, {transform_indices = @transform_9, window_bounds = array<i64: 2, 4>}]} {
    %c0 = arith.constant 0 : index
    %c0_0 = arith.constant 0 : index
    %0 = vector.load %arg2[%c0, %c0_0] : memref<2x768xbf16, #tpu.memory_space<vmem>>, vector<2x768xbf16>
    %c0_1 = arith.constant 0 : index
    %c0_2 = arith.constant 0 : index
    %1 = vector.load %arg3[%c0_1, %c0_2] : memref<768x128xbf16, #tpu.memory_space<vmem>>, vector<768x128xbf16>
    %cst = arith.constant dense<0.000000e+00> : vector<2x128xf32>
    %2 = tpu.matmul %0, %1, %cst {dimension_numbers = #tpu.dot_dimension_numbers<[1], [0], [0], [1], [0, 0, 1, 1], [], []>} : vector<2x768xbf16>, vector<768x128xbf16>, vector<2x128xf32> -> vector<2x128xf32>
    %c0_3 = arith.constant 0 : index
    %c0_4 = arith.constant 0 : index
    %3 = vector.load %arg4[%c0_3, %c0_4] : memref<1x128xf32, #tpu.memory_space<vmem>>, vector<1x128xf32>
    %4 = vector.broadcast %3 : vector<1x128xf32> to vector<2x128xf32>
    %5 = arith.addf %2, %4 : vector<2x128xf32>
    %6 = arith.truncf %5 : vector<2x128xf32> to vector<2x128xbf16>
    %c0_5 = arith.constant 0 : index
    %c0_6 = arith.constant 0 : index
    %7 = vector.load %arg5[%c0_5, %c0_6] : memref<128x512xbf16, #tpu.memory_space<vmem>>, vector<128x512xbf16>
    %cst_7 = arith.constant dense<0.000000e+00> : vector<2x512xf32>
    %8 = tpu.matmul %6, %7, %cst_7 {dimension_numbers = #tpu.dot_dimension_numbers<[1], [0], [0], [1], [0, 0, 1, 1], [], []>} : vector<2x128xbf16>, vector<128x512xbf16>, vector<2x512xf32> -> vector<2x512xf32>
    %c0_8 = arith.constant 0 : index
    %c0_9 = arith.constant 0 : index
    %9 = vector.load %arg6[%c0_8, %c0_9] : memref<1x512xf32, #tpu.memory_space<vmem>>, vector<1x512xf32>
    %10 = vector.broadcast %9 : vector<1x512xf32> to vector<2x512xf32>
    %11 = arith.addf %8, %10 : vector<2x512xf32>
    %12 = arith.mulf %11, %11 : vector<2x512xf32>
    %cst_10 = arith.constant dense<0.000000e+00> : vector<2xf32>
    %13 = vector.multi_reduction <add>, %12, %cst_10 [1] : vector<2x512xf32> to vector<2xf32>
    %14 = vector.shape_cast %13 : vector<2xf32> to vector<2x1xf32>
    %cst_11 = arith.constant 9.99999996E-13 : f32
    %15 = vector.broadcast %cst_11 : f32 to vector<2x1xf32>
    %16 = arith.addf %14, %15 : vector<2x1xf32>
    %17 = math.rsqrt %16 : vector<2x1xf32>
    %18 = vector.broadcast %17 : vector<2x1xf32> to vector<2x512xf32>
    %19 = arith.mulf %11, %18 : vector<2x512xf32>
    %c0_12 = arith.constant 0 : index
    %20 = memref.load %arg10[%c0_12] : memref<1xf32, #tpu.memory_space<smem>>
    %21 = vector.broadcast %20 : f32 to vector<2x512xf32>
    %22 = arith.mulf %19, %21 : vector<2x512xf32>
    %cst_13 = arith.constant 0.000000e+00 : f32
    %23 = vector.broadcast %cst_13 : f32 to vector<1x128xf32>
    %c0_14 = arith.constant 0 : index
    %c0_15 = arith.constant 0 : index
    %24 = memref.load %arg1[%c0_14, %c0_15] : memref<4x8xi32, #tpu.memory_space<smem>>
    %25 = arith.index_cast %24 : i32 to index
    %c0_16 = arith.constant 0 : index
    %26 = vector.load %arg7[%25, %c0_16] : memref<64x128xf32, #tpu.memory_space<vmem>>, vector<1x128xf32>
    %27 = arith.addf %23, %26 : vector<1x128xf32>
    %c0_17 = arith.constant 0 : index
    %c1 = arith.constant 1 : index
    %28 = memref.load %arg1[%c0_17, %c1] : memref<4x8xi32, #tpu.memory_space<smem>>
    %29 = arith.index_cast %28 : i32 to index
    %c0_18 = arith.constant 0 : index
    %30 = vector.load %arg7[%29, %c0_18] : memref<64x128xf32, #tpu.memory_space<vmem>>, vector<1x128xf32>
    %31 = arith.addf %27, %30 : vector<1x128xf32>
    %c0_19 = arith.constant 0 : index
    %c2 = arith.constant 2 : index
    %32 = memref.load %arg1[%c0_19, %c2] : memref<4x8xi32, #tpu.memory_space<smem>>
    %33 = arith.index_cast %32 : i32 to index
    %c0_20 = arith.constant 0 : index
    %34 = vector.load %arg7[%33, %c0_20] : memref<64x128xf32, #tpu.memory_space<vmem>>, vector<1x128xf32>
    %35 = arith.addf %31, %34 : vector<1x128xf32>
    %c0_21 = arith.constant 0 : index
    %c3 = arith.constant 3 : index
    %36 = memref.load %arg1[%c0_21, %c3] : memref<4x8xi32, #tpu.memory_space<smem>>
    %37 = arith.index_cast %36 : i32 to index
    %c0_22 = arith.constant 0 : index
    %38 = vector.load %arg7[%37, %c0_22] : memref<64x128xf32, #tpu.memory_space<vmem>>, vector<1x128xf32>
    %39 = arith.addf %35, %38 : vector<1x128xf32>
    %c0_23 = arith.constant 0 : index
    %c4 = arith.constant 4 : index
    %40 = memref.load %arg1[%c0_23, %c4] : memref<4x8xi32, #tpu.memory_space<smem>>
    %41 = arith.index_cast %40 : i32 to index
    %c0_24 = arith.constant 0 : index
    %42 = vector.load %arg7[%41, %c0_24] : memref<64x128xf32, #tpu.memory_space<vmem>>, vector<1x128xf32>
    %43 = arith.addf %39, %42 : vector<1x128xf32>
    %c0_25 = arith.constant 0 : index
    %c5 = arith.constant 5 : index
    %44 = memref.load %arg1[%c0_25, %c5] : memref<4x8xi32, #tpu.memory_space<smem>>
    %45 = arith.index_cast %44 : i32 to index
    %c0_26 = arith.constant 0 : index
    %46 = vector.load %arg7[%45, %c0_26] : memref<64x128xf32, #tpu.memory_space<vmem>>, vector<1x128xf32>
    %47 = arith.addf %43, %46 : vector<1x128xf32>
    %c0_27 = arith.constant 0 : index
    %c6 = arith.constant 6 : index
    %48 = memref.load %arg1[%c0_27, %c6] : memref<4x8xi32, #tpu.memory_space<smem>>
    %49 = arith.index_cast %48 : i32 to index
    %c0_28 = arith.constant 0 : index
    %50 = vector.load %arg7[%49, %c0_28] : memref<64x128xf32, #tpu.memory_space<vmem>>, vector<1x128xf32>
    %51 = arith.addf %47, %50 : vector<1x128xf32>
    %c0_29 = arith.constant 0 : index
    %c7 = arith.constant 7 : index
    %52 = memref.load %arg1[%c0_29, %c7] : memref<4x8xi32, #tpu.memory_space<smem>>
    %53 = arith.index_cast %52 : i32 to index
    %c0_30 = arith.constant 0 : index
    %54 = vector.load %arg7[%53, %c0_30] : memref<64x128xf32, #tpu.memory_space<vmem>>, vector<1x128xf32>
    %55 = arith.addf %51, %54 : vector<1x128xf32>
    %cst_31 = arith.constant 0.000000e+00 : f32
    %56 = vector.broadcast %cst_31 : f32 to vector<1x128xf32>
    %c1_32 = arith.constant 1 : index
    %c0_33 = arith.constant 0 : index
    %57 = memref.load %arg1[%c1_32, %c0_33] : memref<4x8xi32, #tpu.memory_space<smem>>
    %58 = arith.index_cast %57 : i32 to index
    %c0_34 = arith.constant 0 : index
    %59 = vector.load %arg7[%58, %c0_34] : memref<64x128xf32, #tpu.memory_space<vmem>>, vector<1x128xf32>
    %60 = arith.addf %56, %59 : vector<1x128xf32>
    %c1_35 = arith.constant 1 : index
    %c1_36 = arith.constant 1 : index
    %61 = memref.load %arg1[%c1_35, %c1_36] : memref<4x8xi32, #tpu.memory_space<smem>>
    %62 = arith.index_cast %61 : i32 to index
    %c0_37 = arith.constant 0 : index
    %63 = vector.load %arg7[%62, %c0_37] : memref<64x128xf32, #tpu.memory_space<vmem>>, vector<1x128xf32>
    %64 = arith.addf %60, %63 : vector<1x128xf32>
    %c1_38 = arith.constant 1 : index
    %c2_39 = arith.constant 2 : index
    %65 = memref.load %arg1[%c1_38, %c2_39] : memref<4x8xi32, #tpu.memory_space<smem>>
    %66 = arith.index_cast %65 : i32 to index
    %c0_40 = arith.constant 0 : index
    %67 = vector.load %arg7[%66, %c0_40] : memref<64x128xf32, #tpu.memory_space<vmem>>, vector<1x128xf32>
    %68 = arith.addf %64, %67 : vector<1x128xf32>
    %c1_41 = arith.constant 1 : index
    %c3_42 = arith.constant 3 : index
    %69 = memref.load %arg1[%c1_41, %c3_42] : memref<4x8xi32, #tpu.memory_space<smem>>
    %70 = arith.index_cast %69 : i32 to index
    %c0_43 = arith.constant 0 : index
    %71 = vector.load %arg7[%70, %c0_43] : memref<64x128xf32, #tpu.memory_space<vmem>>, vector<1x128xf32>
    %72 = arith.addf %68, %71 : vector<1x128xf32>
    %c1_44 = arith.constant 1 : index
    %c4_45 = arith.constant 4 : index
    %73 = memref.load %arg1[%c1_44, %c4_45] : memref<4x8xi32, #tpu.memory_space<smem>>
    %74 = arith.index_cast %73 : i32 to index
    %c0_46 = arith.constant 0 : index
    %75 = vector.load %arg7[%74, %c0_46] : memref<64x128xf32, #tpu.memory_space<vmem>>, vector<1x128xf32>
    %76 = arith.addf %72, %75 : vector<1x128xf32>
    %c1_47 = arith.constant 1 : index
    %c5_48 = arith.constant 5 : index
    %77 = memref.load %arg1[%c1_47, %c5_48] : memref<4x8xi32, #tpu.memory_space<smem>>
    %78 = arith.index_cast %77 : i32 to index
    %c0_49 = arith.constant 0 : index
    %79 = vector.load %arg7[%78, %c0_49] : memref<64x128xf32, #tpu.memory_space<vmem>>, vector<1x128xf32>
    %80 = arith.addf %76, %79 : vector<1x128xf32>
    %c1_50 = arith.constant 1 : index
    %c6_51 = arith.constant 6 : index
    %81 = memref.load %arg1[%c1_50, %c6_51] : memref<4x8xi32, #tpu.memory_space<smem>>
    %82 = arith.index_cast %81 : i32 to index
    %c0_52 = arith.constant 0 : index
    %83 = vector.load %arg7[%82, %c0_52] : memref<64x128xf32, #tpu.memory_space<vmem>>, vector<1x128xf32>
    %84 = arith.addf %80, %83 : vector<1x128xf32>
    %c1_53 = arith.constant 1 : index
    %c7_54 = arith.constant 7 : index
    %85 = memref.load %arg1[%c1_53, %c7_54] : memref<4x8xi32, #tpu.memory_space<smem>>
    %86 = arith.index_cast %85 : i32 to index
    %c0_55 = arith.constant 0 : index
    %87 = vector.load %arg7[%86, %c0_55] : memref<64x128xf32, #tpu.memory_space<vmem>>, vector<1x128xf32>
    %88 = arith.addf %84, %87 : vector<1x128xf32>
    %cst_56 = arith.constant 0.000000e+00 : f32
    %89 = vector.broadcast %cst_56 : f32 to vector<1x128xf32>
    %c2_57 = arith.constant 2 : index
    %c0_58 = arith.constant 0 : index
    %90 = memref.load %arg1[%c2_57, %c0_58] : memref<4x8xi32, #tpu.memory_space<smem>>
    %91 = arith.index_cast %90 : i32 to index
    %c0_59 = arith.constant 0 : index
    %92 = vector.load %arg7[%91, %c0_59] : memref<64x128xf32, #tpu.memory_space<vmem>>, vector<1x128xf32>
    %93 = arith.addf %89, %92 : vector<1x128xf32>
    %c2_60 = arith.constant 2 : index
    %c1_61 = arith.constant 1 : index
    %94 = memref.load %arg1[%c2_60, %c1_61] : memref<4x8xi32, #tpu.memory_space<smem>>
    %95 = arith.index_cast %94 : i32 to index
    %c0_62 = arith.constant 0 : index
    %96 = vector.load %arg7[%95, %c0_62] : memref<64x128xf32, #tpu.memory_space<vmem>>, vector<1x128xf32>
    %97 = arith.addf %93, %96 : vector<1x128xf32>
    %c2_63 = arith.constant 2 : index
    %c2_64 = arith.constant 2 : index
    %98 = memref.load %arg1[%c2_63, %c2_64] : memref<4x8xi32, #tpu.memory_space<smem>>
    %99 = arith.index_cast %98 : i32 to index
    %c0_65 = arith.constant 0 : index
    %100 = vector.load %arg7[%99, %c0_65] : memref<64x128xf32, #tpu.memory_space<vmem>>, vector<1x128xf32>
    %101 = arith.addf %97, %100 : vector<1x128xf32>
    %c2_66 = arith.constant 2 : index
    %c3_67 = arith.constant 3 : index
    %102 = memref.load %arg1[%c2_66, %c3_67] : memref<4x8xi32, #tpu.memory_space<smem>>
    %103 = arith.index_cast %102 : i32 to index
    %c0_68 = arith.constant 0 : index
    %104 = vector.load %arg7[%103, %c0_68] : memref<64x128xf32, #tpu.memory_space<vmem>>, vector<1x128xf32>
    %105 = arith.addf %101, %104 : vector<1x128xf32>
    %c2_69 = arith.constant 2 : index
    %c4_70 = arith.constant 4 : index
    %106 = memref.load %arg1[%c2_69, %c4_70] : memref<4x8xi32, #tpu.memory_space<smem>>
    %107 = arith.index_cast %106 : i32 to index
    %c0_71 = arith.constant 0 : index
    %108 = vector.load %arg7[%107, %c0_71] : memref<64x128xf32, #tpu.memory_space<vmem>>, vector<1x128xf32>
    %109 = arith.addf %105, %108 : vector<1x128xf32>
    %c2_72 = arith.constant 2 : index
    %c5_73 = arith.constant 5 : index
    %110 = memref.load %arg1[%c2_72, %c5_73] : memref<4x8xi32, #tpu.memory_space<smem>>
    %111 = arith.index_cast %110 : i32 to index
    %c0_74 = arith.constant 0 : index
    %112 = vector.load %arg7[%111, %c0_74] : memref<64x128xf32, #tpu.memory_space<vmem>>, vector<1x128xf32>
    %113 = arith.addf %109, %112 : vector<1x128xf32>
    %c2_75 = arith.constant 2 : index
    %c6_76 = arith.constant 6 : index
    %114 = memref.load %arg1[%c2_75, %c6_76] : memref<4x8xi32, #tpu.memory_space<smem>>
    %115 = arith.index_cast %114 : i32 to index
    %c0_77 = arith.constant 0 : index
    %116 = vector.load %arg7[%115, %c0_77] : memref<64x128xf32, #tpu.memory_space<vmem>>, vector<1x128xf32>
    %117 = arith.addf %113, %116 : vector<1x128xf32>
    %c2_78 = arith.constant 2 : index
    %c7_79 = arith.constant 7 : index
    %118 = memref.load %arg1[%c2_78, %c7_79] : memref<4x8xi32, #tpu.memory_space<smem>>
    %119 = arith.index_cast %118 : i32 to index
    %c0_80 = arith.constant 0 : index
    %120 = vector.load %arg7[%119, %c0_80] : memref<64x128xf32, #tpu.memory_space<vmem>>, vector<1x128xf32>
    %121 = arith.addf %117, %120 : vector<1x128xf32>
    %cst_81 = arith.constant 0.000000e+00 : f32
    %122 = vector.broadcast %cst_81 : f32 to vector<1x128xf32>
    %c3_82 = arith.constant 3 : index
    %c0_83 = arith.constant 0 : index
    %123 = memref.load %arg1[%c3_82, %c0_83] : memref<4x8xi32, #tpu.memory_space<smem>>
    %124 = arith.index_cast %123 : i32 to index
    %c0_84 = arith.constant 0 : index
    %125 = vector.load %arg7[%124, %c0_84] : memref<64x128xf32, #tpu.memory_space<vmem>>, vector<1x128xf32>
    %126 = arith.addf %122, %125 : vector<1x128xf32>
    %c3_85 = arith.constant 3 : index
    %c1_86 = arith.constant 1 : index
    %127 = memref.load %arg1[%c3_85, %c1_86] : memref<4x8xi32, #tpu.memory_space<smem>>
    %128 = arith.index_cast %127 : i32 to index
    %c0_87 = arith.constant 0 : index
    %129 = vector.load %arg7[%128, %c0_87] : memref<64x128xf32, #tpu.memory_space<vmem>>, vector<1x128xf32>
    %130 = arith.addf %126, %129 : vector<1x128xf32>
    %c3_88 = arith.constant 3 : index
    %c2_89 = arith.constant 2 : index
    %131 = memref.load %arg1[%c3_88, %c2_89] : memref<4x8xi32, #tpu.memory_space<smem>>
    %132 = arith.index_cast %131 : i32 to index
    %c0_90 = arith.constant 0 : index
    %133 = vector.load %arg7[%132, %c0_90] : memref<64x128xf32, #tpu.memory_space<vmem>>, vector<1x128xf32>
    %134 = arith.addf %130, %133 : vector<1x128xf32>
    %c3_91 = arith.constant 3 : index
    %c3_92 = arith.constant 3 : index
    %135 = memref.load %arg1[%c3_91, %c3_92] : memref<4x8xi32, #tpu.memory_space<smem>>
    %136 = arith.index_cast %135 : i32 to index
    %c0_93 = arith.constant 0 : index
    %137 = vector.load %arg7[%136, %c0_93] : memref<64x128xf32, #tpu.memory_space<vmem>>, vector<1x128xf32>
    %138 = arith.addf %134, %137 : vector<1x128xf32>
    %c3_94 = arith.constant 3 : index
    %c4_95 = arith.constant 4 : index
    %139 = memref.load %arg1[%c3_94, %c4_95] : memref<4x8xi32, #tpu.memory_space<smem>>
    %140 = arith.index_cast %139 : i32 to index
    %c0_96 = arith.constant 0 : index
    %141 = vector.load %arg7[%140, %c0_96] : memref<64x128xf32, #tpu.memory_space<vmem>>, vector<1x128xf32>
    %142 = arith.addf %138, %141 : vector<1x128xf32>
    %c3_97 = arith.constant 3 : index
    %c5_98 = arith.constant 5 : index
    %143 = memref.load %arg1[%c3_97, %c5_98] : memref<4x8xi32, #tpu.memory_space<smem>>
    %144 = arith.index_cast %143 : i32 to index
    %c0_99 = arith.constant 0 : index
    %145 = vector.load %arg7[%144, %c0_99] : memref<64x128xf32, #tpu.memory_space<vmem>>, vector<1x128xf32>
    %146 = arith.addf %142, %145 : vector<1x128xf32>
    %c3_100 = arith.constant 3 : index
    %c6_101 = arith.constant 6 : index
    %147 = memref.load %arg1[%c3_100, %c6_101] : memref<4x8xi32, #tpu.memory_space<smem>>
    %148 = arith.index_cast %147 : i32 to index
    %c0_102 = arith.constant 0 : index
    %149 = vector.load %arg7[%148, %c0_102] : memref<64x128xf32, #tpu.memory_space<vmem>>, vector<1x128xf32>
    %150 = arith.addf %146, %149 : vector<1x128xf32>
    %c3_103 = arith.constant 3 : index
    %c7_104 = arith.constant 7 : index
    %151 = memref.load %arg1[%c3_103, %c7_104] : memref<4x8xi32, #tpu.memory_space<smem>>
    %152 = arith.index_cast %151 : i32 to index
    %c0_105 = arith.constant 0 : index
    %153 = vector.load %arg7[%152, %c0_105] : memref<64x128xf32, #tpu.memory_space<vmem>>, vector<1x128xf32>
    %154 = arith.addf %150, %153 : vector<1x128xf32>
    %155 = tpu.concatenate %55, %88, %121, %154 in 0 : vector<1x128xf32>, vector<1x128xf32>, vector<1x128xf32>, vector<1x128xf32> -> vector<4x128xf32>
    %cst_106 = arith.constant 1.250000e-01 : f32
    %156 = vector.broadcast %cst_106 : f32 to vector<4x128xf32>
    %157 = arith.mulf %155, %156 : vector<4x128xf32>
    %158 = arith.truncf %157 : vector<4x128xf32> to vector<4x128xbf16>
    %c0_107 = arith.constant 0 : index
    %c0_108 = arith.constant 0 : index
    %159 = vector.load %arg8[%c0_107, %c0_108] : memref<128x512xbf16, #tpu.memory_space<vmem>>, vector<128x512xbf16>
    %cst_109 = arith.constant dense<0.000000e+00> : vector<4x512xf32>
    %160 = tpu.matmul %158, %159, %cst_109 {dimension_numbers = #tpu.dot_dimension_numbers<[1], [0], [0], [1], [0, 0, 1, 1], [], []>} : vector<4x128xbf16>, vector<128x512xbf16>, vector<4x512xf32> -> vector<4x512xf32>
    %c0_110 = arith.constant 0 : index
    %c0_111 = arith.constant 0 : index
    %161 = vector.load %arg9[%c0_110, %c0_111] : memref<1x512xf32, #tpu.memory_space<vmem>>, vector<1x512xf32>
    %162 = vector.broadcast %161 : vector<1x512xf32> to vector<4x512xf32>
    %163 = arith.addf %160, %162 : vector<4x512xf32>
    %164 = arith.mulf %163, %163 : vector<4x512xf32>
    %cst_112 = arith.constant dense<0.000000e+00> : vector<4xf32>
    %165 = vector.multi_reduction <add>, %164, %cst_112 [1] : vector<4x512xf32> to vector<4xf32>
    %166 = vector.shape_cast %165 : vector<4xf32> to vector<4x1xf32>
    %cst_113 = arith.constant 9.99999996E-13 : f32
    %167 = vector.broadcast %cst_113 : f32 to vector<4x1xf32>
    %168 = arith.addf %166, %167 : vector<4x1xf32>
    %169 = math.rsqrt %168 : vector<4x1xf32>
    %170 = vector.broadcast %169 : vector<4x1xf32> to vector<4x512xf32>
    %171 = arith.mulf %163, %170 : vector<4x512xf32>
    %172 = arith.truncf %22 : vector<2x512xf32> to vector<2x512xbf16>
    %173 = arith.truncf %171 : vector<4x512xf32> to vector<4x512xbf16>
    %cst_114 = arith.constant dense<0.000000e+00> : vector<2x4xf32>
    %174 = tpu.matmul %172, %173, %cst_114 {dimension_numbers = #tpu.dot_dimension_numbers<[1], [1], [0], [0], [0, 0, 1, 0], [], []>} : vector<2x512xbf16>, vector<4x512xbf16>, vector<2x4xf32> -> vector<2x4xf32>
    %c0_115 = arith.constant 0 : index
    %c0_116 = arith.constant 0 : index
    %175 = vector.load %arg11[%c0_115, %c0_116] : memref<2x4xf32, #tpu.memory_space<vmem>>, vector<2x4xf32>
    tpu.vector_store %arg11[%c0_115, %c0_116], %174 {strides = array<i32>} : memref<2x4xf32, #tpu.memory_space<vmem>>, vector<2x4xf32>,
    return
  }
  func.func @transform_0(%arg0: i32, %arg1: memref<4x8xi32, #tpu.memory_space<smem>>) -> (i32, i32) {
    %c0_i32 = arith.constant 0 : i32
    %c0_i32_0 = arith.constant 0 : i32
    return %arg0, %c0_i32 : i32, i32
  }
  func.func @transform_1(%arg0: i32, %arg1: memref<4x8xi32, #tpu.memory_space<smem>>) -> (i32, i32) {
    %c0_i32 = arith.constant 0 : i32
    %c0_i32_0 = arith.constant 0 : i32
    %c0_i32_1 = arith.constant 0 : i32
    return %c0_i32, %c0_i32_0 : i32, i32
  }
  func.func @transform_2(%arg0: i32, %arg1: memref<4x8xi32, #tpu.memory_space<smem>>) -> (i32, i32) {
    %c0_i32 = arith.constant 0 : i32
    %c0_i32_0 = arith.constant 0 : i32
    %c0_i32_1 = arith.constant 0 : i32
    return %c0_i32, %c0_i32_0 : i32, i32
  }
  func.func @transform_3(%arg0: i32, %arg1: memref<4x8xi32, #tpu.memory_space<smem>>) -> (i32, i32) {
    %c0_i32 = arith.constant 0 : i32
    %c0_i32_0 = arith.constant 0 : i32
    %c0_i32_1 = arith.constant 0 : i32
    return %c0_i32, %c0_i32_0 : i32, i32
  }
  func.func @transform_4(%arg0: i32, %arg1: memref<4x8xi32, #tpu.memory_space<smem>>) -> (i32, i32) {
    %c0_i32 = arith.constant 0 : i32
    %c0_i32_0 = arith.constant 0 : i32
    %c0_i32_1 = arith.constant 0 : i32
    return %c0_i32, %c0_i32_0 : i32, i32
  }
  func.func @transform_5(%arg0: i32, %arg1: memref<4x8xi32, #tpu.memory_space<smem>>) -> (i32, i32) {
    %c0_i32 = arith.constant 0 : i32
    %c0_i32_0 = arith.constant 0 : i32
    %c0_i32_1 = arith.constant 0 : i32
    return %c0_i32, %c0_i32_0 : i32, i32
  }
  func.func @transform_6(%arg0: i32, %arg1: memref<4x8xi32, #tpu.memory_space<smem>>) -> (i32, i32) {
    %c0_i32 = arith.constant 0 : i32
    %c0_i32_0 = arith.constant 0 : i32
    %c0_i32_1 = arith.constant 0 : i32
    return %c0_i32, %c0_i32_0 : i32, i32
  }
  func.func @transform_7(%arg0: i32, %arg1: memref<4x8xi32, #tpu.memory_space<smem>>) -> (i32, i32) {
    %c0_i32 = arith.constant 0 : i32
    %c0_i32_0 = arith.constant 0 : i32
    %c0_i32_1 = arith.constant 0 : i32
    return %c0_i32, %c0_i32_0 : i32, i32
  }
  func.func @transform_8(%arg0: i32, %arg1: memref<4x8xi32, #tpu.memory_space<smem>>) -> i32 {
    %c0_i32 = arith.constant 0 : i32
    %c0_i32_0 = arith.constant 0 : i32
    return %c0_i32 : i32
  }
  func.func @transform_9(%arg0: i32, %arg1: memref<4x8xi32, #tpu.memory_space<smem>>) -> (i32, i32) {
    %c0_i32 = arith.constant 0 : i32
    %c0_i32_0 = arith.constant 0 : i32
    return %arg0, %c0_i32 : i32, i32
  }
}

</mosaic_0001>

<llo_original>
// kernel: hybrid_model_forward.1
$region0: #{hybrid_model_forward.1}
  #allocation0 [shape = 'u32[]', space=smem, size = 0x4, offset = 0x4, fixed_abs, tag = 'smem constant byte address 0x4 - core index']
  #allocation1 [shape = 'u32[144,128]{1,0:T(1,128)}', space=vmem, size = 0x12000, scoped, tag = 'internal scratch']
  #allocation2 [shape = 's32[1]{0}', space=sflag, size = 0x4, scoped, tag = 'scoped memory for hybrid_model_forward.1']
  #allocation3 [shape = 'u8[2048]{0}', space=smem, size = 0x800, scoped, tag = 'prefetched SMEM operand 0']
  #allocation4 [shape = 'f32[1]{0:T(128)S(6)}', space=smem, size = 0x200, scoped, tag = 'scoped memory for hybrid_model_forward.1']
  %s0 = inlined_call_operand.vmem [shape: s32[4,8], index: 0, kind: input, shape index: {}]
  %s1 = inlined_call_operand.vmem [shape: bf16[2,768], index: 1, kind: input, shape index: {}]
  %s2 = inlined_call_operand.vmem [shape: bf16[768,128], index: 2, kind: input, shape index: {}]
  %s3 = inlined_call_operand.vmem [shape: f32[1,128], index: 3, kind: input, shape index: {}]
  %s4 = inlined_call_operand.vmem [shape: bf16[128,512], index: 4, kind: input, shape index: {}]
  %s5 = inlined_call_operand.vmem [shape: f32[1,512], index: 5, kind: input, shape index: {}]
  %s6 = inlined_call_operand.vmem [shape: f32[64,128], index: 6, kind: input, shape index: {}]
  %s7 = inlined_call_operand.vmem [shape: bf16[128,512], index: 7, kind: input, shape index: {}]
  %s8 = inlined_call_operand.vmem [shape: f32[1,512], index: 8, kind: input, shape index: {}]
  %s9 = inlined_call_operand.<no memory space> [shape: f32[1], index: 9, kind: input, shape index: {}]
  %s10 = inlined_call_operand.vmem [shape: f32[2,4], index: 10, kind: output, shape index: {}]
  %s11 = sld [smem:[#allocation0]]
  $region46: #{hybrid_model_forward.1} parent=0
    _
  %s13 = ssub.s32 1, %s11
  %s14 = scalar_select 0, %s13, %s11
  %s15 = sshll.u32 %s0, 4
  %s16 = int_to_ptr.vmem [resolvable:$true] %s15
  %18 = dma.vmem_to_smem %s16, 64, [#allocation3], [#allocation2]
  %19 = sst [smem:[#allocation4]] %s9
  %20 = dma.done [#allocation2], 64
  %21 = sfence
  // Predicated region
  $region2: #{hybrid_model_forward.1} parent=0 // pred_check
    _
  $region3: #{hybrid_model_forward.1} parent=0 // pred_check_branch
    %23 = sbr.rel (0) target = $region5
  $region4: #{hybrid_model_forward.1} parent=0 // pred_region
    _
  $region5: #{hybrid_model_forward.1} parent=0 // pred_fallthru
    _
  // Predicated region
  $region6: #{hybrid_model_forward.1} parent=0 // pred_check
    _
  $region7: #{hybrid_model_forward.1} parent=0 // pred_check_branch
    %25 = sbr.rel (0) target = $region9
  $region8: #{hybrid_model_forward.1} parent=0 // pred_region
    _
  $region9: #{hybrid_model_forward.1} parent=0 // pred_fallthru
    _
  // Predicated region
  $region10: #{hybrid_model_forward.1} parent=0 // pred_check
    _
  $region11: #{hybrid_model_forward.1} parent=0 // pred_check_branch
    %27 = sbr.rel (0) target = $region13
  $region12: #{hybrid_model_forward.1} parent=0 // pred_region
    _
  $region13: #{hybrid_model_forward.1} parent=0 // pred_fallthru
    _
  // Predicated region
  $region14: #{hybrid_model_forward.1} parent=0 // pred_check
    _
  $region15: #{hybrid_model_forward.1} parent=0 // pred_check_branch
    %29 = sbr.rel (0) target = $region17
  $region16: #{hybrid_model_forward.1} parent=0 // pred_region
    _
  $region17: #{hybrid_model_forward.1} parent=0 // pred_fallthru
    _
  // Predicated region
  $region18: #{hybrid_model_forward.1} parent=0 // pred_check
    _
  $region19: #{hybrid_model_forward.1} parent=0 // pred_check_branch
    %31 = sbr.rel (0) target = $region21
  $region20: #{hybrid_model_forward.1} parent=0 // pred_region
    _
  $region21: #{hybrid_model_forward.1} parent=0 // pred_fallthru
    _
  // Predicated region
  $region22: #{hybrid_model_forward.1} parent=0 // pred_check
    _
  $region23: #{hybrid_model_forward.1} parent=0 // pred_check_branch
    %33 = sbr.rel (0) target = $region25
  $region24: #{hybrid_model_forward.1} parent=0 // pred_region
    _
  $region25: #{hybrid_model_forward.1} parent=0 // pred_fallthru
    _
  // Predicated region
  $region26: #{hybrid_model_forward.1} parent=0 // pred_check
    _
  $region27: #{hybrid_model_forward.1} parent=0 // pred_check_branch
    %35 = sbr.rel (0) target = $region29
  $region28: #{hybrid_model_forward.1} parent=0 // pred_region
    _
  $region29: #{hybrid_model_forward.1} parent=0 // pred_fallthru
    _
  // Predicated region
  $region30: #{hybrid_model_forward.1} parent=0 // pred_check
    _
  $region31: #{hybrid_model_forward.1} parent=0 // pred_check_branch
    %37 = sbr.rel (0) target = $region33
  $region32: #{hybrid_model_forward.1} parent=0 // pred_region
    _
  $region33: #{hybrid_model_forward.1} parent=0 // pred_fallthru
    _
  // Predicated region
  $region34: #{hybrid_model_forward.1} parent=0 // pred_check
    _
  $region35: #{hybrid_model_forward.1} parent=0 // pred_check_branch
    %39 = sbr.rel (0) target = $region37
  $region36: #{hybrid_model_forward.1} parent=0 // pred_region
    _
  $region37: #{hybrid_model_forward.1} parent=0 // pred_fallthru
    _
  %v41 = vld [vmem:[%s1] sm:$0x3f]
  %v42 = vld [vmem:[%s2] sm:$0xf]
  %v43 = vld [vmem:[%s2 + $0x4] sm:$0xf]
  %v44 = vld [vmem:[%s2 + $0x8] sm:$0xf]
  %v45 = vld [vmem:[%s2 + $0xc] sm:$0xf]
  %v46 = vld [vmem:[%s2 + $0x10] sm:$0xf]
  %v47 = vld [vmem:[%s2 + $0x14] sm:$0xf]
  %v48 = vld [vmem:[%s2 + $0x18] sm:$0xf]
  %v49 = vld [vmem:[%s2 + $0x1c] sm:$0xf]
  %v50 = vld [vmem:[%s2 + $0x20] sm:$0xf]
  %v51 = vld [vmem:[%s2 + $0x24] sm:$0xf]
  %v52 = vld [vmem:[%s2 + $0x28] sm:$0xf]
  %v53 = vld [vmem:[%s2 + $0x2c] sm:$0xf]
  %v54 = vld [vmem:[%s2 + $0x30] sm:$0xf]
  %v55 = vld [vmem:[%s2 + $0x34] sm:$0xf]
  %v56 = vld [vmem:[%s2 + $0x38] sm:$0xf]
  %v57 = vld [vmem:[%s2 + $0x3c] sm:$0xf]
  %v58 = vld [vmem:[%s2 + $0x40] sm:$0xf]
  %v59 = vld [vmem:[%s2 + $0x44] sm:$0xf]
  %v60 = vld [vmem:[%s2 + $0x48] sm:$0xf]
  %v61 = vld [vmem:[%s2 + $0x4c] sm:$0xf]
  %v62 = vld [vmem:[%s2 + $0x50] sm:$0xf]
  %v63 = vld [vmem:[%s2 + $0x54] sm:$0xf]
  %v64 = vld [vmem:[%s2 + $0x58] sm:$0xf]
  %v65 = vld [vmem:[%s2 + $0x5c] sm:$0xf]
  %v66 = vld [vmem:[%s2 + $0x60] sm:$0xf]
  %v67 = vld [vmem:[%s2 + $0x64] sm:$0xf]
  %v68 = vld [vmem:[%s2 + $0x68] sm:$0xf]
  %v69 = vld [vmem:[%s2 + $0x6c] sm:$0xf]
  %v70 = vld [vmem:[%s2 + $0x70] sm:$0xf]
  %v71 = vld [vmem:[%s2 + $0x74] sm:$0xf]
  %v72 = vld [vmem:[%s2 + $0x78] sm:$0xf]
  %v73 = vld [vmem:[%s2 + $0x7c] sm:$0xf]
  %v74 = vld [vmem:[%s2 + $0x80] sm:$0xf]
  %v75 = vld [vmem:[%s2 + $0x84] sm:$0xf]
  %v76 = vld [vmem:[%s2 + $0x88] sm:$0xf]
  %v77 = vld [vmem:[%s2 + $0x8c] sm:$0xf]
  %v78 = vld [vmem:[%s2 + $0x90] sm:$0xf]
  %v79 = vld [vmem:[%s2 + $0x94] sm:$0xf]
  %v80 = vld [vmem:[%s2 + $0x98] sm:$0xf]
  %v81 = vld [vmem:[%s2 + $0x9c] sm:$0xf]
  %v82 = vld [vmem:[%s2 + $0xa0] sm:$0xf]
  %v83 = vld [vmem:[%s2 + $0xa4] sm:$0xf]
  %v84 = vld [vmem:[%s2 + $0xa8] sm:$0xf]
  %v85 = vld [vmem:[%s2 + $0xac] sm:$0xf]
  %v86 = vld [vmem:[%s2 + $0xb0] sm:$0xf]
  %v87 = vld [vmem:[%s2 + $0xb4] sm:$0xf]
  %v88 = vld [vmem:[%s2 + $0xb8] sm:$0xf]
  %v89 = vld [vmem:[%s2 + $0xbc] sm:$0xf]
  %v90 = vld [vmem:[%s2 + $0xc0] sm:$0xf]
  %v91 = vld [vmem:[%s2 + $0xc4] sm:$0xf]
  %v92 = vld [vmem:[%s2 + $0xc8] sm:$0xf]
  %v93 = vld [vmem:[%s2 + $0xcc] sm:$0xf]
  %v94 = vld [vmem:[%s2 + $0xd0] sm:$0xf]
  %v95 = vld [vmem:[%s2 + $0xd4] sm:$0xf]
  %v96 = vld [vmem:[%s2 + $0xd8] sm:$0xf]
  %v97 = vld [vmem:[%s2 + $0xdc] sm:$0xf]
  %v98 = vld [vmem:[%s2 + $0xe0] sm:$0xf]
  %v99 = vld [vmem:[%s2 + $0xe4] sm:$0xf]
  %v100 = vld [vmem:[%s2 + $0xe8] sm:$0xf]
  %v101 = vld [vmem:[%s2 + $0xec] sm:$0xf]
  %v102 = vld [vmem:[%s2 + $0xf0] sm:$0xf]
  %v103 = vld [vmem:[%s2 + $0xf4] sm:$0xf]
  %v104 = vld [vmem:[%s2 + $0xf8] sm:$0xf]
  %v105 = vld [vmem:[%s2 + $0xfc] sm:$0xf]
  %v106 = vld [vmem:[%s2 + $0x100] sm:$0xf]
  %v107 = vld [vmem:[%s2 + $0x104] sm:$0xf]
  %v108 = vld [vmem:[%s2 + $0x108] sm:$0xf]
  %v109 = vld [vmem:[%s2 + $0x10c] sm:$0xf]
  %v110 = vld [vmem:[%s2 + $0x110] sm:$0xf]
  %v111 = vld [vmem:[%s2 + $0x114] sm:$0xf]
  %v112 = vld [vmem:[%s2 + $0x118] sm:$0xf]
  %v113 = vld [vmem:[%s2 + $0x11c] sm:$0xf]
  %v114 = vld [vmem:[%s2 + $0x120] sm:$0xf]
  %v115 = vld [vmem:[%s2 + $0x124] sm:$0xf]
  %v116 = vld [vmem:[%s2 + $0x128] sm:$0xf]
  %v117 = vld [vmem:[%s2 + $0x12c] sm:$0xf]
  %v118 = vld [vmem:[%s2 + $0x130] sm:$0xf]
  %v119 = vld [vmem:[%s2 + $0x134] sm:$0xf]
  %v120 = vld [vmem:[%s2 + $0x138] sm:$0xf]
  %v121 = vld [vmem:[%s2 + $0x13c] sm:$0xf]
  %v122 = vld [vmem:[%s2 + $0x140] sm:$0xf]
  %v123 = vld [vmem:[%s2 + $0x144] sm:$0xf]
  %v124 = vld [vmem:[%s2 + $0x148] sm:$0xf]
  %v125 = vld [vmem:[%s2 + $0x14c] sm:$0xf]
  %v126 = vld [vmem:[%s2 + $0x150] sm:$0xf]
  %v127 = vld [vmem:[%s2 + $0x154] sm:$0xf]
  %v128 = vld [vmem:[%s2 + $0x158] sm:$0xf]
  %v129 = vld [vmem:[%s2 + $0x15c] sm:$0xf]
  %v130 = vld [vmem:[%s2 + $0x160] sm:$0xf]
  %v131 = vld [vmem:[%s2 + $0x164] sm:$0xf]
  %v132 = vld [vmem:[%s2 + $0x168] sm:$0xf]
  %v133 = vld [vmem:[%s2 + $0x16c] sm:$0xf]
  %v134 = vld [vmem:[%s2 + $0x170] sm:$0xf]
  %v135 = vld [vmem:[%s2 + $0x174] sm:$0xf]
  %v136 = vld [vmem:[%s2 + $0x178] sm:$0xf]
  %v137 = vld [vmem:[%s2 + $0x17c] sm:$0xf]
  %v138 = vld [vmem:[%s3] sm:$0x1]
  %v140 = vlaneseq
  %v141 = vshrl.u32 %v140, 7
  %v142 = vsub.s32 0, %v141
  %v143 = vrot.slane %v138, %v142
  %v146 = vcombine.high %v41, %v41
  %v148 = vunpack.c.l.s4 1966171168
  %v149 = vunpack.c.0.s8 %v148
  %v150 = vlaneseq
  %v151 = vshrl.u32 %v150, 7
  %v152 = vsub.s32 %v149, %v151
  %v153 = vrot.slane %v41, %v152
  %v155 = vunpack.c.l.s4 1966171168
  %v156 = vunpack.c.0.s8 %v155
  %v157 = vlaneseq
  %v158 = vshrl.u32 %v157, 7
  %v159 = vsub.s32 %v156, %v158
  %v160 = vrot.slane %v146, %v159
  %v161 = vcombine.high %v153, %v153
  %v162 = vcombine.high %v160, %v160
  %v164 = vunpack.c.l.s4 1966171168
  %v165 = vunpack.c.0.s8 %v164
  %v166 = vlaneseq
  %v167 = vshrl.u32 %v166, 7
  %v168 = vsub.s32 %v165, %v167
  %v169 = vrot.slane %v153, %v168
  %v171 = vunpack.c.l.s4 1966171168
  %v172 = vunpack.c.0.s8 %v171
  %v173 = vlaneseq
  %v174 = vshrl.u32 %v173, 7
  %v175 = vsub.s32 %v172, %v174
  %v176 = vrot.slane %v160, %v175
  %v178 = vunpack.c.l.s4 1966171168
  %v179 = vunpack.c.0.s8 %v178
  %v180 = vlaneseq
  %v181 = vshrl.u32 %v180, 7
  %v182 = vsub.s32 %v179, %v181
  %v183 = vrot.slane %v161, %v182
  %v185 = vunpack.c.l.s4 1966171168
  %v186 = vunpack.c.0.s8 %v185
  %v187 = vlaneseq
  %v188 = vshrl.u32 %v187, 7
  %v189 = vsub.s32 %v186, %v188
  %v190 = vrot.slane %v162, %v189
  %v191 = vcombine.high %v169, %v169
  %v192 = vcombine.high %v183, %v183
  %v295 = vunpack.c.l.b16 %v42
  %v296 = vunpack.c.l.b16 %v43
  %v297 = vunpack.c.l.b16 %v44
  %v298 = vunpack.c.l.b16 %v45
  %v299 = vunpack.c.l.b16 %v46
  %v300 = vunpack.c.l.b16 %v47
  %v301 = vunpack.c.l.b16 %v48
  %v302 = vunpack.c.l.b16 %v49
  %v303 = vunpack.c.l.b16 %v50
  %v304 = vunpack.c.l.b16 %v51
  %v305 = vunpack.c.l.b16 %v52
  %v306 = vunpack.c.l.b16 %v53
  %v307 = vunpack.c.l.b16 %v54
  %v308 = vunpack.c.l.b16 %v55
  %v309 = vunpack.c.l.b16 %v56
  %v310 = vunpack.c.l.b16 %v57
  %v311 = vunpack.c.l.b16 %v58
  %v312 = vunpack.c.l.b16 %v59
  %v313 = vunpack.c.l.b16 %v60
  %v314 = vunpack.c.l.b16 %v61
  %v315 = vunpack.c.l.b16 %v62
  %v316 = vunpack.c.l.b16 %v63
  %v317 = vunpack.c.l.b16 %v64
  %v318 = vunpack.c.l.b16 %v65
  %v319 = vunpack.c.l.b16 %v66
  %v320 = vunpack.c.l.b16 %v67
  %v321 = vunpack.c.l.b16 %v68
  %v322 = vunpack.c.l.b16 %v69
  %v323 = vunpack.c.l.b16 %v70
  %v324 = vunpack.c.l.b16 %v71
  %v325 = vunpack.c.l.b16 %v72
  %v326 = vunpack.c.l.b16 %v73
  %v327 = vunpack.c.l.b16 %v74
  %v328 = vunpack.c.l.b16 %v75
  %v329 = vunpack.c.l.b16 %v76
  %v330 = vunpack.c.l.b16 %v77
  %v331 = vunpack.c.l.b16 %v78
  %v332 = vunpack.c.l.b16 %v79
  %v333 = vunpack.c.l.b16 %v80
  %v334 = vunpack.c.l.b16 %v81
  %v335 = vunpack.c.l.b16 %v82
  %v336 = vunpack.c.l.b16 %v83
  %v337 = vunpack.c.l.b16 %v84
  %v338 = vunpack.c.l.b16 %v85
  %v339 = vunpack.c.l.b16 %v86
  %v340 = vunpack.c.l.b16 %v87
  %v341 = vunpack.c.l.b16 %v88
  %v342 = vunpack.c.l.b16 %v89
  %v343 = vunpack.c.l.b16 %v90
  %v344 = vunpack.c.l.b16 %v91
  %v345 = vunpack.c.l.b16 %v92
  %v346 = vunpack.c.l.b16 %v93
  %v347 = vunpack.c.l.b16 %v94
  %v348 = vunpack.c.l.b16 %v95
  %v349 = vunpack.c.l.b16 %v96
  %v350 = vunpack.c.l.b16 %v97
  %v351 = vunpack.c.l.b16 %v98
  %v352 = vunpack.c.l.b16 %v99
  %v353 = vunpack.c.l.b16 %v100
  %v354 = vunpack.c.l.b16 %v101
  %v355 = vunpack.c.l.b16 %v102
  %v356 = vunpack.c.l.b16 %v103
  %v357 = vunpack.c.l.b16 %v104
  %v358 = vunpack.c.l.b16 %v105
  %v359 = vunpack.c.l.b16 %v106
  %v360 = vunpack.c.l.b16 %v107
  %v361 = vunpack.c.l.b16 %v108
  %v362 = vunpack.c.l.b16 %v109
  %v363 = vunpack.c.l.b16 %v110
  %v364 = vunpack.c.l.b16 %v111
  %v365 = vunpack.c.l.b16 %v112
  %v366 = vunpack.c.l.b16 %v113
  %v367 = vunpack.c.l.b16 %v114
  %v368 = vunpack.c.l.b16 %v115
  %v369 = vunpack.c.l.b16 %v116
  %v370 = vunpack.c.l.b16 %v117
  %v371 = vunpack.c.l.b16 %v118
  %v372 = vunpack.c.l.b16 %v119
  %v373 = vunpack.c.l.b16 %v120
  %v374 = vunpack.c.l.b16 %v121
  %v375 = vunpack.c.l.b16 %v122
  %v376 = vunpack.c.l.b16 %v123
  %v377 = vunpack.c.l.b16 %v124
  %v378 = vunpack.c.l.b16 %v125
  %v379 = vunpack.c.l.b16 %v126
  %v380 = vunpack.c.l.b16 %v127
  %v381 = vunpack.c.l.b16 %v128
  %v382 = vunpack.c.l.b16 %v129
  %v383 = vunpack.c.l.b16 %v130
  %v384 = vunpack.c.l.b16 %v131
  %v385 = vunpack.c.l.b16 %v132
  %v386 = vunpack.c.l.b16 %v133
  %v387 = vunpack.c.l.b16 %v134
  %v388 = vunpack.c.l.b16 %v135
  %v389 = vunpack.c.l.b16 %v136
  %v390 = vunpack.c.l.b16 %v137
  %v391 = vpack.c.b16 %v296, %v295
  %v392 = vpack.c.b16 %v298, %v297
  %v393 = vpack.c.b16 %v300, %v299
  %v394 = vpack.c.b16 %v302, %v301
  %v395 = vpack.c.b16 %v304, %v303
  %v396 = vpack.c.b16 %v306, %v305
  %v397 = vpack.c.b16 %v308, %v307
  %v398 = vpack.c.b16 %v310, %v309
  %v399 = vpack.c.b16 %v312, %v311
  %v400 = vpack.c.b16 %v314, %v313
  %v401 = vpack.c.b16 %v316, %v315
  %v402 = vpack.c.b16 %v318, %v317
  %v403 = vpack.c.b16 %v320, %v319
  %v404 = vpack.c.b16 %v322, %v321
  %v405 = vpack.c.b16 %v324, %v323
  %v406 = vpack.c.b16 %v326, %v325
  %v407 = vpack.c.b16 %v328, %v327
  %v408 = vpack.c.b16 %v330, %v329
  %v409 = vpack.c.b16 %v332, %v331
  %v410 = vpack.c.b16 %v334, %v333
  %v411 = vpack.c.b16 %v336, %v335
  %v412 = vpack.c.b16 %v338, %v337
  %v413 = vpack.c.b16 %v340, %v339
  %v414 = vpack.c.b16 %v342, %v341
  %v415 = vpack.c.b16 %v344, %v343
  %v416 = vpack.c.b16 %v346, %v345
  %v417 = vpack.c.b16 %v348, %v347
  %v418 = vpack.c.b16 %v350, %v349
  %v419 = vpack.c.b16 %v352, %v351
  %v420 = vpack.c.b16 %v354, %v353
  %v421 = vpack.c.b16 %v356, %v355
  %v422 = vpack.c.b16 %v358, %v357
  %v423 = vpack.c.b16 %v360, %v359
  %v424 = vpack.c.b16 %v362, %v361
  %v425 = vpack.c.b16 %v364, %v363
  %v426 = vpack.c.b16 %v366, %v365
  %v427 = vpack.c.b16 %v368, %v367
  %v428 = vpack.c.b16 %v370, %v369
  %v429 = vpack.c.b16 %v372, %v371
  %v430 = vpack.c.b16 %v374, %v373
  %v431 = vpack.c.b16 %v376, %v375
  %v432 = vpack.c.b16 %v378, %v377
  %v433 = vpack.c.b16 %v380, %v379
  %v434 = vpack.c.b16 %v382, %v381
  %v435 = vpack.c.b16 %v384, %v383
  %v436 = vpack.c.b16 %v386, %v385
  %v437 = vpack.c.b16 %v388, %v387
  %v438 = vpack.c.b16 %v390, %v389
  %487 = vmatprep.subr.bf16.mxu0 0
  %488 = vmatpush1.bf16.msra.mxu0 %v398
  %489 = vmatprep.subr.bf16.mxu0 0
  %490 = vmatpush1.bf16.msra.mxu0 %v397
  %491 = vmatprep.subr.bf16.mxu0 0
  %492 = vmatpush1.bf16.msra.mxu0 %v396
  %493 = vmatprep.subr.bf16.mxu0 0
  %494 = vmatpush1.bf16.msra.mxu0 %v395
  %495 = vmatprep.subr.bf16.mxu0 0
  %496 = vmatpush1.bf16.msra.mxu0 %v394
  %497 = vmatprep.subr.bf16.mxu0 0
  %498 = vmatpush1.bf16.msra.mxu0 %v393
  %499 = vmatprep.subr.bf16.mxu0 0
  %500 = vmatpush1.bf16.msra.mxu0 %v392
  %501 = vmatprep.subr.bf16.mxu0 0
  %502 = vmatpush1.bf16.msra.mxu0 %v391
  %503 = vmatprep.subr.bf16.mxu0 0
  %504 = vmatpush2.bf16.msra.mxu0 %v406
  %505 = vmatprep.subr.bf16.mxu0 0
  %506 = vmatpush2.bf16.msra.mxu0 %v405
  %507 = vmatprep.subr.bf16.mxu0 0
  %508 = vmatpush2.bf16.msra.mxu0 %v404
  %509 = vmatprep.subr.bf16.mxu0 0
  %510 = vmatpush2.bf16.msra.mxu0 %v403
  %511 = vmatprep.subr.bf16.mxu0 0
  %512 = vmatpush2.bf16.msra.mxu0 %v402
  %513 = vmatprep.subr.bf16.mxu0 0
  %514 = vmatpush2.bf16.msra.mxu0 %v401
  %515 = vmatprep.subr.bf16.mxu0 0
  %516 = vmatpush2.bf16.msra.mxu0 %v400
  %517 = vmatprep.subr.bf16.mxu0 0
  %518 = vmatpush2.bf16.msra.mxu0 %v399
  %519 = vmatprep.mubr.bf16.mxu0 %v183
  %520 = vmatmul.mubr.bf16.gmra.mxu0 %v169
  %v521 = vpop.f32.mrf.mxu0
  %v522 = vadd.f32 %v143, %v521
  %v523 = vpop.f32.mrf.mxu0
  %v524 = vpop.f32.mrf.mxu0
  %v525 = vpop.f32.mrf.mxu0
  %526 = vdwg.mxu0
  %527 = vmatprep.subr.bf16.mxu0 0
  %528 = vmatpush1.bf16.msra.mxu0 %v414
  %529 = vmatprep.subr.bf16.mxu0 0
  %530 = vmatpush1.bf16.msra.mxu0 %v413
  %531 = vmatprep.subr.bf16.mxu0 0
  %532 = vmatpush1.bf16.msra.mxu0 %v412
  %533 = vmatprep.subr.bf16.mxu0 0
  %534 = vmatpush1.bf16.msra.mxu0 %v411
  %535 = vmatprep.subr.bf16.mxu0 0
  %536 = vmatpush1.bf16.msra.mxu0 %v410
  %537 = vmatprep.subr.bf16.mxu0 0
  %538 = vmatpush1.bf16.msra.mxu0 %v409
  %539 = vmatprep.subr.bf16.mxu0 0
  %540 = vmatpush1.bf16.msra.mxu0 %v408
  %541 = vmatprep.subr.bf16.mxu0 0
  %542 = vmatpush1.bf16.msra.mxu0 %v407
  %543 = vmatprep.subr.bf16.mxu0 0
  %544 = vmatpush2.bf16.msra.mxu0 %v422
  %545 = vmatprep.subr.bf16.mxu0 0
  %546 = vmatpush2.bf16.msra.mxu0 %v421
  %547 = vmatprep.subr.bf16.mxu0 0
  %548 = vmatpush2.bf16.msra.mxu0 %v420
  %549 = vmatprep.subr.bf16.mxu0 0
  %550 = vmatpush2.bf16.msra.mxu0 %v419
  %551 = vmatprep.subr.bf16.mxu0 0
  %552 = vmatpush2.bf16.msra.mxu0 %v418
  %553 = vmatprep.subr.bf16.mxu0 0
  %554 = vmatpush2.bf16.msra.mxu0 %v417
  %555 = vmatprep.subr.bf16.mxu0 0
  %556 = vmatpush2.bf16.msra.mxu0 %v416
  %557 = vmatprep.subr.bf16.mxu0 0
  %558 = vmatpush2.bf16.msra.mxu0 %v415
  %559 = vmatprep.mubr.bf16.mxu0 %v192
  %560 = vmatmul.mubr.bf16.gmra.mxu0 %v191
  %v561 = vpop.f32.mrf.mxu0
  %v562 = vadd.f32 %v522, %v561
  %v563 = vpop.f32.mrf.mxu0
  %v564 = vpop.f32.mrf.mxu0
  %v565 = vpop.f32.mrf.mxu0
  %566 = vdwg.mxu0
  %567 = vmatprep.subr.bf16.mxu0 0
  %568 = vmatpush1.bf16.msra.mxu0 %v430
  %569 = vmatprep.subr.bf16.mxu0 0
  %570 = vmatpush1.bf16.msra.mxu0 %v429
  %571 = vmatprep.subr.bf16.mxu0 0
  %572 = vmatpush1.bf16.msra.mxu0 %v428
  %573 = vmatprep.subr.bf16.mxu0 0
  %574 = vmatpush1.bf16.msra.mxu0 %v427
  %575 = vmatprep.subr.bf16.mxu0 0
  %576 = vmatpush1.bf16.msra.mxu0 %v426
  %577 = vmatprep.subr.bf16.mxu0 0
  %578 = vmatpush1.bf16.msra.mxu0 %v425
  %579 = vmatprep.subr.bf16.mxu0 0
  %580 = vmatpush1.bf16.msra.mxu0 %v424
  %581 = vmatprep.subr.bf16.mxu0 0
  %582 = vmatpush1.bf16.msra.mxu0 %v423
  %583 = vmatprep.subr.bf16.mxu0 0
  %584 = vmatpush2.bf16.msra.mxu0 %v438
  %585 = vmatprep.subr.bf16.mxu0 0
  %586 = vmatpush2.bf16.msra.mxu0 %v437
  %587 = vmatprep.subr.bf16.mxu0 0
  %588 = vmatpush2.bf16.msra.mxu0 %v436
  %589 = vmatprep.subr.bf16.mxu0 0
  %590 = vmatpush2.bf16.msra.mxu0 %v435
  %591 = vmatprep.subr.bf16.mxu0 0
  %592 = vmatpush2.bf16.msra.mxu0 %v434
  %593 = vmatprep.subr.bf16.mxu0 0
  %594 = vmatpush2.bf16.msra.mxu0 %v433
  %595 = vmatprep.subr.bf16.mxu0 0
  %596 = vmatpush2.bf16.msra.mxu0 %v432
  %597 = vmatprep.subr.bf16.mxu0 0
  %598 = vmatpush2.bf16.msra.mxu0 %v431
  %599 = vmatprep.mubr.bf16.mxu0 %v190
  %600 = vmatmul.mubr.bf16.gmra.mxu0 %v176
  %v601 = vpop.f32.mrf.mxu0
  %v602 = vadd.f32 %v562, %v601
  %v603 = vpop.f32.mrf.mxu0
  %v604 = vpop.f32.mrf.mxu0
  %v605 = vpop.f32.mrf.mxu0
  %606 = vdwg.mxu0
  %v607 = vpack.c.bf16 %v602, %v602
  %v608 = vld [vmem:[%s4] sm:$0xff]
  %v609 = vld [vmem:[%s4 + $0x8] sm:$0xff]
  %v610 = vld [vmem:[%s4 + $0x10] sm:$0xff]
  %v611 = vld [vmem:[%s4 + $0x18] sm:$0xff]
  %v612 = vld [vmem:[%s4 + $0x20] sm:$0xff]
  %v613 = vld [vmem:[%s4 + $0x28] sm:$0xff]
  %v614 = vld [vmem:[%s4 + $0x30] sm:$0xff]
  %v615 = vld [vmem:[%s4 + $0x38] sm:$0xff]
  %v616 = vld [vmem:[%s4 + $0x40] sm:$0xff]
  %v617 = vld [vmem:[%s4 + $0x48] sm:$0xff]
  %v618 = vld [vmem:[%s4 + $0x50] sm:$0xff]
  %v619 = vld [vmem:[%s4 + $0x58] sm:$0xff]
  %v620 = vld [vmem:[%s4 + $0x60] sm:$0xff]
  %v621 = vld [vmem:[%s4 + $0x68] sm:$0xff]
  %v622 = vld [vmem:[%s4 + $0x70] sm:$0xff]
  %v623 = vld [vmem:[%s4 + $0x78] sm:$0xff]
  %v624 = vld [vmem:[%s4 + $0x80] sm:$0xff]
  %v625 = vld [vmem:[%s4 + $0x88] sm:$0xff]
  %v626 = vld [vmem:[%s4 + $0x90] sm:$0xff]
  %v627 = vld [vmem:[%s4 + $0x98] sm:$0xff]
  %v628 = vld [vmem:[%s4 + $0xa0] sm:$0xff]
  %v629 = vld [vmem:[%s4 + $0xa8] sm:$0xff]
  %v630 = vld [vmem:[%s4 + $0xb0] sm:$0xff]
  %v631 = vld [vmem:[%s4 + $0xb8] sm:$0xff]
  %v632 = vld [vmem:[%s4 + $0xc0] sm:$0xff]
  %v633 = vld [vmem:[%s4 + $0xc8] sm:$0xff]
  %v634 = vld [vmem:[%s4 + $0xd0] sm:$0xff]
  %v635 = vld [vmem:[%s4 + $0xd8] sm:$0xff]
  %v636 = vld [vmem:[%s4 + $0xe0] sm:$0xff]
  %v637 = vld [vmem:[%s4 + $0xe8] sm:$0xff]
  %v638 = vld [vmem:[%s4 + $0xf0] sm:$0xff]
  %v639 = vld [vmem:[%s4 + $0xf8] sm:$0xff]
  %v640 = vld [vmem:[%s5] sm:$0xf]
  %v642 = vlaneseq
  %v643 = vshrl.u32 %v642, 7
  %v644 = vsub.s32 0, %v643
  %v645 = vrot.slane %v640, %v644
  %v646 = vlaneseq
  %v647 = vshrl.u32 %v646, 7
  %v648 = vsub.s32 1, %v647
  %v649 = vrot.slane %v640, %v648
  %v650 = vlaneseq
  %v651 = vshrl.u32 %v650, 7
  %v652 = vsub.s32 2, %v651
  %v653 = vrot.slane %v640, %v652
  %v654 = vlaneseq
  %v655 = vshrl.u32 %v654, 7
  %v656 = vsub.s32 3, %v655
  %v657 = vrot.slane %v640, %v656
  %v694 = vunpack.c.l.b16 %v608
  %v695 = vunpack.c.h.b16 %v608
  %v696 = vunpack.c.l.b16 %v609
  %v697 = vunpack.c.h.b16 %v609
  %v698 = vunpack.c.l.b16 %v610
  %v699 = vunpack.c.h.b16 %v610
  %v700 = vunpack.c.l.b16 %v611
  %v701 = vunpack.c.h.b16 %v611
  %v702 = vunpack.c.l.b16 %v612
  %v703 = vunpack.c.h.b16 %v612
  %v704 = vunpack.c.l.b16 %v613
  %v705 = vunpack.c.h.b16 %v613
  %v706 = vunpack.c.l.b16 %v614
  %v707 = vunpack.c.h.b16 %v614
  %v708 = vunpack.c.l.b16 %v615
  %v709 = vunpack.c.h.b16 %v615
  %v710 = vunpack.c.l.b16 %v616
  %v711 = vunpack.c.h.b16 %v616
  %v712 = vunpack.c.l.b16 %v617
  %v713 = vunpack.c.h.b16 %v617
  %v714 = vunpack.c.l.b16 %v618
  %v715 = vunpack.c.h.b16 %v618
  %v716 = vunpack.c.l.b16 %v619
  %v717 = vunpack.c.h.b16 %v619
  %v718 = vunpack.c.l.b16 %v620
  %v719 = vunpack.c.h.b16 %v620
  %v720 = vunpack.c.l.b16 %v621
  %v721 = vunpack.c.h.b16 %v621
  %v722 = vunpack.c.l.b16 %v622
  %v723 = vunpack.c.h.b16 %v622
  %v724 = vunpack.c.l.b16 %v623
  %v725 = vunpack.c.h.b16 %v623
  %v726 = vunpack.c.l.b16 %v624
  %v727 = vunpack.c.h.b16 %v624
  %v728 = vunpack.c.l.b16 %v625
  %v729 = vunpack.c.h.b16 %v625
  %v730 = vunpack.c.l.b16 %v626
  %v731 = vunpack.c.h.b16 %v626
  %v732 = vunpack.c.l.b16 %v627
  %v733 = vunpack.c.h.b16 %v627
  %v734 = vunpack.c.l.b16 %v628
  %v735 = vunpack.c.h.b16 %v628
  %v736 = vunpack.c.l.b16 %v629
  %v737 = vunpack.c.h.b16 %v629
  %v738 = vunpack.c.l.b16 %v630
  %v739 = vunpack.c.h.b16 %v630
  %v740 = vunpack.c.l.b16 %v631
  %v741 = vunpack.c.h.b16 %v631
  %v742 = vunpack.c.l.b16 %v632
  %v743 = vunpack.c.h.b16 %v632
  %v744 = vunpack.c.l.b16 %v633
  %v745 = vunpack.c.h.b16 %v633
  %v746 = vunpack.c.l.b16 %v634
  %v747 = vunpack.c.h.b16 %v634
  %v748 = vunpack.c.l.b16 %v635
  %v749 = vunpack.c.h.b16 %v635
  %v750 = vunpack.c.l.b16 %v636
  %v751 = vunpack.c.h.b16 %v636
  %v752 = vunpack.c.l.b16 %v637
  %v753 = vunpack.c.h.b16 %v637
  %v754 = vunpack.c.l.b16 %v638
  %v755 = vunpack.c.h.b16 %v638
  %v756 = vunpack.c.l.b16 %v639
  %v757 = vunpack.c.h.b16 %v639
  %v758 = vpack.c.b16 %v698, %v694
  %v759 = vpack.c.b16 %v699, %v695
  %v760 = vpack.c.b16 %v700, %v696
  %v761 = vpack.c.b16 %v701, %v697
  %v762 = vpack.c.b16 %v706, %v702
  %v763 = vpack.c.b16 %v707, %v703
  %v764 = vpack.c.b16 %v708, %v704
  %v765 = vpack.c.b16 %v709, %v705
  %v766 = vpack.c.b16 %v714, %v710
  %v767 = vpack.c.b16 %v715, %v711
  %v768 = vpack.c.b16 %v716, %v712
  %v769 = vpack.c.b16 %v717, %v713
  %v770 = vpack.c.b16 %v722, %v718
  %v771 = vpack.c.b16 %v723, %v719
  %v772 = vpack.c.b16 %v724, %v720
  %v773 = vpack.c.b16 %v725, %v721
  %v774 = vpack.c.b16 %v730, %v726
  %v775 = vpack.c.b16 %v731, %v727
  %v776 = vpack.c.b16 %v732, %v728
  %v777 = vpack.c.b16 %v733, %v729
  %v778 = vpack.c.b16 %v738, %v734
  %v779 = vpack.c.b16 %v739, %v735
  %v780 = vpack.c.b16 %v740, %v736
  %v781 = vpack.c.b16 %v741, %v737
  %v782 = vpack.c.b16 %v746, %v742
  %v783 = vpack.c.b16 %v747, %v743
  %v784 = vpack.c.b16 %v748, %v744
  %v785 = vpack.c.b16 %v749, %v745
  %v786 = vpack.c.b16 %v754, %v750
  %v787 = vpack.c.b16 %v755, %v751
  %v788 = vpack.c.b16 %v756, %v752
  %v789 = vpack.c.b16 %v757, %v753
  %822 = vmatprep.subr.bf16.mxu0 %v787
  %823 = vmatpush1.bf16.msra.mxu0 %v786
  %824 = vmatprep.subr.bf16.mxu0 %v783
  %825 = vmatpush1.bf16.msra.mxu0 %v782
  %826 = vmatprep.subr.bf16.mxu0 %v779
  %827 = vmatpush1.bf16.msra.mxu0 %v778
  %828 = vmatprep.subr.bf16.mxu0 %v775
  %829 = vmatpush1.bf16.msra.mxu0 %v774
  %830 = vmatprep.subr.bf16.mxu0 %v771
  %831 = vmatpush1.bf16.msra.mxu0 %v770
  %832 = vmatprep.subr.bf16.mxu0 %v767
  %833 = vmatpush1.bf16.msra.mxu0 %v766
  %834 = vmatprep.subr.bf16.mxu0 %v763
  %835 = vmatpush1.bf16.msra.mxu0 %v762
  %836 = vmatprep.subr.bf16.mxu0 %v759
  %837 = vmatpush1.bf16.msra.mxu0 %v758
  %838 = vmatprep.subr.bf16.mxu0 0
  %839 = vmatpush2.bf16.msra.mxu0 0
  %840 = vmatprep.subr.bf16.mxu0 0
  %841 = vmatpush2.bf16.msra.mxu0 0
  %842 = vmatprep.subr.bf16.mxu0 0
  %843 = vmatpush2.bf16.msra.mxu0 0
  %844 = vmatprep.subr.bf16.mxu0 0
  %845 = vmatpush2.bf16.msra.mxu0 0
  %846 = vmatprep.subr.bf16.mxu0 0
  %847 = vmatpush2.bf16.msra.mxu0 0
  %848 = vmatprep.subr.bf16.mxu0 0
  %849 = vmatpush2.bf16.msra.mxu0 0
  %850 = vmatprep.subr.bf16.mxu0 0
  %851 = vmatpush2.bf16.msra.mxu0 0
  %852 = vmatprep.subr.bf16.mxu0 0
  %853 = vmatpush2.bf16.msra.mxu0 0
  %854 = vmatprep.mubr.bf16.mxu0 0
  %855 = vmatmul.mubr.bf16.gmra.mxu0 %v607
  %v856 = vpop.f32.mrf.mxu0
  %v857 = vadd.f32 %v645, %v856
  %v858 = vpop.f32.mrf.mxu0
  %v859 = vadd.f32 %v649, %v858
  %v860 = vpop.f32.mrf.mxu0
  %v861 = vpop.f32.mrf.mxu0
  %862 = vdwg.mxu0
  %863 = vmatprep.subr.bf16.mxu0 %v789
  %864 = vmatpush1.bf16.msra.mxu0 %v788
  %865 = vmatprep.subr.bf16.mxu0 %v785
  %866 = vmatpush1.bf16.msra.mxu0 %v784
  %867 = vmatprep.subr.bf16.mxu0 %v781
  %868 = vmatpush1.bf16.msra.mxu0 %v780
  %869 = vmatprep.subr.bf16.mxu0 %v777
  %870 = vmatpush1.bf16.msra.mxu0 %v776
  %871 = vmatprep.subr.bf16.mxu0 %v773
  %872 = vmatpush1.bf16.msra.mxu0 %v772
  %873 = vmatprep.subr.bf16.mxu0 %v769
  %874 = vmatpush1.bf16.msra.mxu0 %v768
  %875 = vmatprep.subr.bf16.mxu0 %v765
  %876 = vmatpush1.bf16.msra.mxu0 %v764
  %877 = vmatprep.subr.bf16.mxu0 %v761
  %878 = vmatpush1.bf16.msra.mxu0 %v760
  %879 = vmatprep.subr.bf16.mxu0 0
  %880 = vmatpush2.bf16.msra.mxu0 0
  %881 = vmatprep.subr.bf16.mxu0 0
  %882 = vmatpush2.bf16.msra.mxu0 0
  %883 = vmatprep.subr.bf16.mxu0 0
  %884 = vmatpush2.bf16.msra.mxu0 0
  %885 = vmatprep.subr.bf16.mxu0 0
  %886 = vmatpush2.bf16.msra.mxu0 0
  %887 = vmatprep.subr.bf16.mxu0 0
  %888 = vmatpush2.bf16.msra.mxu0 0
  %889 = vmatprep.subr.bf16.mxu0 0
  %890 = vmatpush2.bf16.msra.mxu0 0
  %891 = vmatprep.subr.bf16.mxu0 0
  %892 = vmatpush2.bf16.msra.mxu0 0
  %893 = vmatprep.subr.bf16.mxu0 0
  %894 = vmatpush2.bf16.msra.mxu0 0
  %895 = vmatprep.mubr.bf16.mxu0 0
  %896 = vmatmul.mubr.bf16.gmra.mxu0 %v607
  %v897 = vpop.f32.mrf.mxu0
  %v898 = vadd.f32 %v653, %v897
  %v899 = vpop.f32.mrf.mxu0
  %v900 = vadd.f32 %v657, %v899
  %v901 = vpop.f32.mrf.mxu0
  %v902 = vpop.f32.mrf.mxu0
  %903 = vdwg.mxu0
  %v904 = vmul.f32 %v857, %v857
  %v905 = vmul.f32 %v859, %v859
  %v906 = vmul.f32 %v898, %v898
  %v907 = vmul.f32 %v900, %v900
  %vm908 = vcmask 1041408
  %v909 = vsel %vm908, %v904, 0.0
  %v910 = vsel %vm908, %v905, 0.0
  %v911 = vadd.f32 %v909, %v910
  %v912 = vsel %vm908, %v906, 0.0
  %v913 = vadd.f32 %v911, %v912
  %v914 = vsel %vm908, %v907, 0.0
  %v915 = vadd.f32 %v913, %v914
  %916 = vadd.xlane.f32.xlu0 %v915
  %v917 = vpop.xlane.xlu0 %916
  %v918 = vadd.f32 %v917, 1e-12
  %v919 = vrsqrt.pop %v918
  %v920 = vmul.f32 %v857, %v919
  %v921 = vmul.f32 %v859, %v919
  %v922 = vmul.f32 %v898, %v919
  %v923 = vmul.f32 %v900, %v919
  %s924 = sld [smem:[#allocation4]]
  %v925 = vstv %s924
  %v926 = vmul.f32 %v920, %v925
  %v927 = vmul.f32 %v921, %v925
  %v928 = vmul.f32 %v922, %v925
  %v929 = vmul.f32 %v923, %v925
  %s930 = sld [smem:[#allocation3]]
  %s931 = scalar_lea.vmem %s6, %s930
  %v932 = vld [vmem:[%s931] sm:$0x1]
  %v933 = vadd.f32 %v932, 0.0
  %s934 = sld [smem:[#allocation3 + $0x1]]
  %s935 = scalar_lea.vmem %s6, %s934
  %v936 = vld [vmem:[%s935] sm:$0x1]
  %v937 = vadd.f32 %v933, %v936
  %s938 = sld [smem:[#allocation3 + $0x2]]
  %s939 = scalar_lea.vmem %s6, %s938
  %v940 = vld [vmem:[%s939] sm:$0x1]
  %v941 = vadd.f32 %v937, %v940
  %s942 = sld [smem:[#allocation3 + $0x3]]
  %s943 = scalar_lea.vmem %s6, %s942
  %v944 = vld [vmem:[%s943] sm:$0x1]
  %v945 = vadd.f32 %v941, %v944
  %s946 = sld [smem:[#allocation3 + $0x4]]
  %s947 = scalar_lea.vmem %s6, %s946
  %v948 = vld [vmem:[%s947] sm:$0x1]
  %v949 = vadd.f32 %v945, %v948
  %s950 = sld [smem:[#allocation3 + $0x5]]
  %s951 = scalar_lea.vmem %s6, %s950
  %v952 = vld [vmem:[%s951] sm:$0x1]
  %v953 = vadd.f32 %v949, %v952
  %s954 = sld [smem:[#allocation3 + $0x6]]
  %s955 = scalar_lea.vmem %s6, %s954
  %v956 = vld [vmem:[%s955] sm:$0x1]
  %v957 = vadd.f32 %v953, %v956
  %s958 = sld [smem:[#allocation3 + $0x7]]
  %s959 = scalar_lea.vmem %s6, %s958
  %v960 = vld [vmem:[%s959] sm:$0x1]
  %v961 = vadd.f32 %v957, %v960
  %s962 = sld [smem:[#allocation3 + $0x80]]
  %s963 = scalar_lea.vmem %s6, %s962
  %v964 = vld [vmem:[%s963] sm:$0x1]
  %v965 = vadd.f32 %v964, 0.0
  %s966 = sld [smem:[#allocation3 + $0x81]]
  %s967 = scalar_lea.vmem %s6, %s966
  %v968 = vld [vmem:[%s967] sm:$0x1]
  %v969 = vadd.f32 %v965, %v968
  %s970 = sld [smem:[#allocation3 + $0x82]]
  %s971 = scalar_lea.vmem %s6, %s970
  %v972 = vld [vmem:[%s971] sm:$0x1]
  %v973 = vadd.f32 %v969, %v972
  %s974 = sld [smem:[#allocation3 + $0x83]]
  %s975 = scalar_lea.vmem %s6, %s974
  %v976 = vld [vmem:[%s975] sm:$0x1]
  %v977 = vadd.f32 %v973, %v976
  %s978 = sld [smem:[#allocation3 + $0x84]]
  %s979 = scalar_lea.vmem %s6, %s978
  %v980 = vld [vmem:[%s979] sm:$0x1]
  %v981 = vadd.f32 %v977, %v980
  %s982 = sld [smem:[#allocation3 + $0x85]]
  %s983 = scalar_lea.vmem %s6, %s982
  %v984 = vld [vmem:[%s983] sm:$0x1]
  %v985 = vadd.f32 %v981, %v984
  %s986 = sld [smem:[#allocation3 + $0x86]]
  %s987 = scalar_lea.vmem %s6, %s986
  %v988 = vld [vmem:[%s987] sm:$0x1]
  %v989 = vadd.f32 %v985, %v988
  %s990 = sld [smem:[#allocation3 + $0x87]]
  %s991 = scalar_lea.vmem %s6, %s990
  %v992 = vld [vmem:[%s991] sm:$0x1]
  %v993 = vadd.f32 %v989, %v992
  %s994 = sld [smem:[#allocation3 + $0x100]]
  %s995 = scalar_lea.vmem %s6, %s994
  %v996 = vld [vmem:[%s995] sm:$0x1]
  %v997 = vadd.f32 %v996, 0.0
  %s998 = sld [smem:[#allocation3 + $0x101]]
  %s999 = scalar_lea.vmem %s6, %s998
  %v1000 = vld [vmem:[%s999] sm:$0x1]
  %v1001 = vadd.f32 %v997, %v1000
  %s1002 = sld [smem:[#allocation3 + $0x102]]
  %s1003 = scalar_lea.vmem %s6, %s1002
  %v1004 = vld [vmem:[%s1003] sm:$0x1]
  %v1005 = vadd.f32 %v1001, %v1004
  %s1006 = sld [smem:[#allocation3 + $0x103]]
  %s1007 = scalar_lea.vmem %s6, %s1006
  %v1008 = vld [vmem:[%s1007] sm:$0x1]
  %v1009 = vadd.f32 %v1005, %v1008
  %s1010 = sld [smem:[#allocation3 + $0x104]]
  %s1011 = scalar_lea.vmem %s6, %s1010
  %v1012 = vld [vmem:[%s1011] sm:$0x1]
  %v1013 = vadd.f32 %v1009, %v1012
  %s1014 = sld [smem:[#allocation3 + $0x105]]
  %s1015 = scalar_lea.vmem %s6, %s1014
  %v1016 = vld [vmem:[%s1015] sm:$0x1]
  %v1017 = vadd.f32 %v1013, %v1016
  %s1018 = sld [smem:[#allocation3 + $0x106]]
  %s1019 = scalar_lea.vmem %s6, %s1018
  %v1020 = vld [vmem:[%s1019] sm:$0x1]
  %v1021 = vadd.f32 %v1017, %v1020
  %s1022 = sld [smem:[#allocation3 + $0x107]]
  %s1023 = scalar_lea.vmem %s6, %s1022
  %v1024 = vld [vmem:[%s1023] sm:$0x1]
  %v1025 = vadd.f32 %v1021, %v1024
  %s1026 = sld [smem:[#allocation3 + $0x180]]
  %s1027 = scalar_lea.vmem %s6, %s1026
  %v1028 = vld [vmem:[%s1027] sm:$0x1]
  %v1029 = vadd.f32 %v1028, 0.0
  %s1030 = sld [smem:[#allocation3 + $0x181]]
  %s1031 = scalar_lea.vmem %s6, %s1030
  %v1032 = vld [vmem:[%s1031] sm:$0x1]
  %v1033 = vadd.f32 %v1029, %v1032
  %s1034 = sld [smem:[#allocation3 + $0x182]]
  %s1035 = scalar_lea.vmem %s6, %s1034
  %v1036 = vld [vmem:[%s1035] sm:$0x1]
  %v1037 = vadd.f32 %v1033, %v1036
  %s1038 = sld [smem:[#allocation3 + $0x183]]
  %s1039 = scalar_lea.vmem %s6, %s1038
  %v1040 = vld [vmem:[%s1039] sm:$0x1]
  %v1041 = vadd.f32 %v1037, %v1040
  %s1042 = sld [smem:[#allocation3 + $0x184]]
  %s1043 = scalar_lea.vmem %s6, %s1042
  %v1044 = vld [vmem:[%s1043] sm:$0x1]
  %v1045 = vadd.f32 %v1041, %v1044
  %s1046 = sld [smem:[#allocation3 + $0x185]]
  %s1047 = scalar_lea.vmem %s6, %s1046
  %v1048 = vld [vmem:[%s1047] sm:$0x1]
  %v1049 = vadd.f32 %v1045, %v1048
  %s1050 = sld [smem:[#allocation3 + $0x186]]
  %s1051 = scalar_lea.vmem %s6, %s1050
  %v1052 = vld [vmem:[%s1051] sm:$0x1]
  %v1053 = vadd.f32 %v1049, %v1052
  %s1054 = sld [smem:[#allocation3 + $0x187]]
  %s1055 = scalar_lea.vmem %s6, %s1054
  %v1056 = vld [vmem:[%s1055] sm:$0x1]
  %v1057 = vadd.f32 %v1053, %v1056
  %v1059 = vrot.slane %v993, 7
  %v1062 = vrot.slane %v1025, 6
  %v1065 = vrot.slane %v1057, 5
  %vm1067 = vcmask 1040384
  %v1068 = vsel %vm1067, %v961, %v1059
  %v1069 = vsel %vm908, %v1068, %v1062
  %vm1070 = vcmask 1042432
  %v1071 = vsel %vm1070, %v1069, %v1065
  %v1072 = vmul.f32 %v1071, 0.125
  %v1073 = vpack.c.bf16 %v1072, %v1072
  %v1074 = vld [vmem:[%s7] sm:$0xff]
  %v1075 = vld [vmem:[%s7 + $0x8] sm:$0xff]
  %v1076 = vld [vmem:[%s7 + $0x10] sm:$0xff]
  %v1077 = vld [vmem:[%s7 + $0x18] sm:$0xff]
  %v1078 = vld [vmem:[%s7 + $0x20] sm:$0xff]
  %v1079 = vld [vmem:[%s7 + $0x28] sm:$0xff]
  %v1080 = vld [vmem:[%s7 + $0x30] sm:$0xff]
  %v1081 = vld [vmem:[%s7 + $0x38] sm:$0xff]
  %v1082 = vld [vmem:[%s7 + $0x40] sm:$0xff]
  %v1083 = vld [vmem:[%s7 + $0x48] sm:$0xff]
  %v1084 = vld [vmem:[%s7 + $0x50] sm:$0xff]
  %v1085 = vld [vmem:[%s7 + $0x58] sm:$0xff]
  %v1086 = vld [vmem:[%s7 + $0x60] sm:$0xff]
  %v1087 = vld [vmem:[%s7 + $0x68] sm:$0xff]
  %v1088 = vld [vmem:[%s7 + $0x70] sm:$0xff]
  %v1089 = vld [vmem:[%s7 + $0x78] sm:$0xff]
  %v1090 = vld [vmem:[%s7 + $0x80] sm:$0xff]
  %v1091 = vld [vmem:[%s7 + $0x88] sm:$0xff]
  %v1092 = vld [vmem:[%s7 + $0x90] sm:$0xff]
  %v1093 = vld [vmem:[%s7 + $0x98] sm:$0xff]
  %v1094 = vld [vmem:[%s7 + $0xa0] sm:$0xff]
  %v1095 = vld [vmem:[%s7 + $0xa8] sm:$0xff]
  %v1096 = vld [vmem:[%s7 + $0xb0] sm:$0xff]
  %v1097 = vld [vmem:[%s7 + $0xb8] sm:$0xff]
  %v1098 = vld [vmem:[%s7 + $0xc0] sm:$0xff]
  %v1099 = vld [vmem:[%s7 + $0xc8] sm:$0xff]
  %v1100 = vld [vmem:[%s7 + $0xd0] sm:$0xff]
  %v1101 = vld [vmem:[%s7 + $0xd8] sm:$0xff]
  %v1102 = vld [vmem:[%s7 + $0xe0] sm:$0xff]
  %v1103 = vld [vmem:[%s7 + $0xe8] sm:$0xff]
  %v1104 = vld [vmem:[%s7 + $0xf0] sm:$0xff]
  %v1105 = vld [vmem:[%s7 + $0xf8] sm:$0xff]
  %v1106 = vld [vmem:[%s8] sm:$0xf]
  %v1108 = vlaneseq
  %v1109 = vshrl.u32 %v1108, 7
  %v1110 = vsub.s32 0, %v1109
  %v1111 = vrot.slane %v1106, %v1110
  %v1112 = vlaneseq
  %v1113 = vshrl.u32 %v1112, 7
  %v1114 = vsub.s32 1, %v1113
  %v1115 = vrot.slane %v1106, %v1114
  %v1116 = vlaneseq
  %v1117 = vshrl.u32 %v1116, 7
  %v1118 = vsub.s32 2, %v1117
  %v1119 = vrot.slane %v1106, %v1118
  %v1120 = vlaneseq
  %v1121 = vshrl.u32 %v1120, 7
  %v1122 = vsub.s32 3, %v1121
  %v1123 = vrot.slane %v1106, %v1122
  %v1160 = vunpack.c.l.b16 %v1074
  %v1161 = vunpack.c.h.b16 %v1074
  %v1162 = vunpack.c.l.b16 %v1075
  %v1163 = vunpack.c.h.b16 %v1075
  %v1164 = vunpack.c.l.b16 %v1076
  %v1165 = vunpack.c.h.b16 %v1076
  %v1166 = vunpack.c.l.b16 %v1077
  %v1167 = vunpack.c.h.b16 %v1077
  %v1168 = vunpack.c.l.b16 %v1078
  %v1169 = vunpack.c.h.b16 %v1078
  %v1170 = vunpack.c.l.b16 %v1079
  %v1171 = vunpack.c.h.b16 %v1079
  %v1172 = vunpack.c.l.b16 %v1080
  %v1173 = vunpack.c.h.b16 %v1080
  %v1174 = vunpack.c.l.b16 %v1081
  %v1175 = vunpack.c.h.b16 %v1081
  %v1176 = vunpack.c.l.b16 %v1082
  %v1177 = vunpack.c.h.b16 %v1082
  %v1178 = vunpack.c.l.b16 %v1083
  %v1179 = vunpack.c.h.b16 %v1083
  %v1180 = vunpack.c.l.b16 %v1084
  %v1181 = vunpack.c.h.b16 %v1084
  %v1182 = vunpack.c.l.b16 %v1085
  %v1183 = vunpack.c.h.b16 %v1085
  %v1184 = vunpack.c.l.b16 %v1086
  %v1185 = vunpack.c.h.b16 %v1086
  %v1186 = vunpack.c.l.b16 %v1087
  %v1187 = vunpack.c.h.b16 %v1087
  %v1188 = vunpack.c.l.b16 %v1088
  %v1189 = vunpack.c.h.b16 %v1088
  %v1190 = vunpack.c.l.b16 %v1089
  %v1191 = vunpack.c.h.b16 %v1089
  %v1192 = vunpack.c.l.b16 %v1090
  %v1193 = vunpack.c.h.b16 %v1090
  %v1194 = vunpack.c.l.b16 %v1091
  %v1195 = vunpack.c.h.b16 %v1091
  %v1196 = vunpack.c.l.b16 %v1092
  %v1197 = vunpack.c.h.b16 %v1092
  %v1198 = vunpack.c.l.b16 %v1093
  %v1199 = vunpack.c.h.b16 %v1093
  %v1200 = vunpack.c.l.b16 %v1094
  %v1201 = vunpack.c.h.b16 %v1094
  %v1202 = vunpack.c.l.b16 %v1095
  %v1203 = vunpack.c.h.b16 %v1095
  %v1204 = vunpack.c.l.b16 %v1096
  %v1205 = vunpack.c.h.b16 %v1096
  %v1206 = vunpack.c.l.b16 %v1097
  %v1207 = vunpack.c.h.b16 %v1097
  %v1208 = vunpack.c.l.b16 %v1098
  %v1209 = vunpack.c.h.b16 %v1098
  %v1210 = vunpack.c.l.b16 %v1099
  %v1211 = vunpack.c.h.b16 %v1099
  %v1212 = vunpack.c.l.b16 %v1100
  %v1213 = vunpack.c.h.b16 %v1100
  %v1214 = vunpack.c.l.b16 %v1101
  %v1215 = vunpack.c.h.b16 %v1101
  %v1216 = vunpack.c.l.b16 %v1102
  %v1217 = vunpack.c.h.b16 %v1102
  %v1218 = vunpack.c.l.b16 %v1103
  %v1219 = vunpack.c.h.b16 %v1103
  %v1220 = vunpack.c.l.b16 %v1104
  %v1221 = vunpack.c.h.b16 %v1104
  %v1222 = vunpack.c.l.b16 %v1105
  %v1223 = vunpack.c.h.b16 %v1105
  %v1224 = vpack.c.b16 %v1164, %v1160
  %v1225 = vpack.c.b16 %v1165, %v1161
  %v1226 = vpack.c.b16 %v1166, %v1162
  %v1227 = vpack.c.b16 %v1167, %v1163
  %v1228 = vpack.c.b16 %v1172, %v1168
  %v1229 = vpack.c.b16 %v1173, %v1169
  %v1230 = vpack.c.b16 %v1174, %v1170
  %v1231 = vpack.c.b16 %v1175, %v1171
  %v1232 = vpack.c.b16 %v1180, %v1176
  %v1233 = vpack.c.b16 %v1181, %v1177
  %v1234 = vpack.c.b16 %v1182, %v1178
  %v1235 = vpack.c.b16 %v1183, %v1179
  %v1236 = vpack.c.b16 %v1188, %v1184
  %v1237 = vpack.c.b16 %v1189, %v1185
  %v1238 = vpack.c.b16 %v1190, %v1186
  %v1239 = vpack.c.b16 %v1191, %v1187
  %v1240 = vpack.c.b16 %v1196, %v1192
  %v1241 = vpack.c.b16 %v1197, %v1193
  %v1242 = vpack.c.b16 %v1198, %v1194
  %v1243 = vpack.c.b16 %v1199, %v1195
  %v1244 = vpack.c.b16 %v1204, %v1200
  %v1245 = vpack.c.b16 %v1205, %v1201
  %v1246 = vpack.c.b16 %v1206, %v1202
  %v1247 = vpack.c.b16 %v1207, %v1203
  %v1248 = vpack.c.b16 %v1212, %v1208
  %v1249 = vpack.c.b16 %v1213, %v1209
  %v1250 = vpack.c.b16 %v1214, %v1210
  %v1251 = vpack.c.b16 %v1215, %v1211
  %v1252 = vpack.c.b16 %v1220, %v1216
  %v1253 = vpack.c.b16 %v1221, %v1217
  %v1254 = vpack.c.b16 %v1222, %v1218
  %v1255 = vpack.c.b16 %v1223, %v1219
  %1288 = vmatprep.subr.bf16.mxu0 %v1253
  %1289 = vmatpush1.bf16.msra.mxu0 %v1252
  %1290 = vmatprep.subr.bf16.mxu0 %v1249
  %1291 = vmatpush1.bf16.msra.mxu0 %v1248
  %1292 = vmatprep.subr.bf16.mxu0 %v1245
  %1293 = vmatpush1.bf16.msra.mxu0 %v1244
  %1294 = vmatprep.subr.bf16.mxu0 %v1241
  %1295 = vmatpush1.bf16.msra.mxu0 %v1240
  %1296 = vmatprep.subr.bf16.mxu0 %v1237
  %1297 = vmatpush1.bf16.msra.mxu0 %v1236
  %1298 = vmatprep.subr.bf16.mxu0 %v1233
  %1299 = vmatpush1.bf16.msra.mxu0 %v1232
  %1300 = vmatprep.subr.bf16.mxu0 %v1229
  %1301 = vmatpush1.bf16.msra.mxu0 %v1228
  %1302 = vmatprep.subr.bf16.mxu0 %v1225
  %1303 = vmatpush1.bf16.msra.mxu0 %v1224
  %1304 = vmatprep.subr.bf16.mxu0 0
  %1305 = vmatpush2.bf16.msra.mxu0 0
  %1306 = vmatprep.subr.bf16.mxu0 0
  %1307 = vmatpush2.bf16.msra.mxu0 0
  %1308 = vmatprep.subr.bf16.mxu0 0
  %1309 = vmatpush2.bf16.msra.mxu0 0
  %1310 = vmatprep.subr.bf16.mxu0 0
  %1311 = vmatpush2.bf16.msra.mxu0 0
  %1312 = vmatprep.subr.bf16.mxu0 0
  %1313 = vmatpush2.bf16.msra.mxu0 0
  %1314 = vmatprep.subr.bf16.mxu0 0
  %1315 = vmatpush2.bf16.msra.mxu0 0
  %1316 = vmatprep.subr.bf16.mxu0 0
  %1317 = vmatpush2.bf16.msra.mxu0 0
  %1318 = vmatprep.subr.bf16.mxu0 0
  %1319 = vmatpush2.bf16.msra.mxu0 0
  %1320 = vmatprep.mubr.bf16.mxu0 0
  %1321 = vmatmul.mubr.bf16.gmra.mxu0 %v1073
  %v1322 = vpop.f32.mrf.mxu0
  %v1323 = vadd.f32 %v1111, %v1322
  %v1324 = vpop.f32.mrf.mxu0
  %v1325 = vadd.f32 %v1115, %v1324
  %v1326 = vpop.f32.mrf.mxu0
  %v1327 = vpop.f32.mrf.mxu0
  %1328 = vdwg.mxu0
  %1329 = vmatprep.subr.bf16.mxu0 %v1255
  %1330 = vmatpush1.bf16.msra.mxu0 %v1254
  %1331 = vmatprep.subr.bf16.mxu0 %v1251
  %1332 = vmatpush1.bf16.msra.mxu0 %v1250
  %1333 = vmatprep.subr.bf16.mxu0 %v1247
  %1334 = vmatpush1.bf16.msra.mxu0 %v1246
  %1335 = vmatprep.subr.bf16.mxu0 %v1243
  %1336 = vmatpush1.bf16.msra.mxu0 %v1242
  %1337 = vmatprep.subr.bf16.mxu0 %v1239
  %1338 = vmatpush1.bf16.msra.mxu0 %v1238
  %1339 = vmatprep.subr.bf16.mxu0 %v1235
  %1340 = vmatpush1.bf16.msra.mxu0 %v1234
  %1341 = vmatprep.subr.bf16.mxu0 %v1231
  %1342 = vmatpush1.bf16.msra.mxu0 %v1230
  %1343 = vmatprep.subr.bf16.mxu0 %v1227
  %1344 = vmatpush1.bf16.msra.mxu0 %v1226
  %1345 = vmatprep.subr.bf16.mxu0 0
  %1346 = vmatpush2.bf16.msra.mxu0 0
  %1347 = vmatprep.subr.bf16.mxu0 0
  %1348 = vmatpush2.bf16.msra.mxu0 0
  %1349 = vmatprep.subr.bf16.mxu0 0
  %1350 = vmatpush2.bf16.msra.mxu0 0
  %1351 = vmatprep.subr.bf16.mxu0 0
  %1352 = vmatpush2.bf16.msra.mxu0 0
  %1353 = vmatprep.subr.bf16.mxu0 0
  %1354 = vmatpush2.bf16.msra.mxu0 0
  %1355 = vmatprep.subr.bf16.mxu0 0
  %1356 = vmatpush2.bf16.msra.mxu0 0
  %1357 = vmatprep.subr.bf16.mxu0 0
  %1358 = vmatpush2.bf16.msra.mxu0 0
  %1359 = vmatprep.subr.bf16.mxu0 0
  %1360 = vmatpush2.bf16.msra.mxu0 0
  %1361 = vmatprep.mubr.bf16.mxu0 0
  %1362 = vmatmul.mubr.bf16.gmra.mxu0 %v1073
  %v1363 = vpop.f32.mrf.mxu0
  %v1364 = vadd.f32 %v1119, %v1363
  %v1365 = vpop.f32.mrf.mxu0
  %v1366 = vadd.f32 %v1123, %v1365
  %v1367 = vpop.f32.mrf.mxu0
  %v1368 = vpop.f32.mrf.mxu0
  %1369 = vdwg.mxu0
  %v1370 = vmul.f32 %v1323, %v1323
  %v1371 = vmul.f32 %v1325, %v1325
  %v1372 = vmul.f32 %v1364, %v1364
  %v1373 = vmul.f32 %v1366, %v1366
  %vm1374 = vcmask 1043456
  %v1375 = vsel %vm1374, %v1370, 0.0
  %v1376 = vsel %vm1374, %v1371, 0.0
  %v1377 = vadd.f32 %v1375, %v1376
  %v1378 = vsel %vm1374, %v1372, 0.0
  %v1379 = vadd.f32 %v1377, %v1378
  %v1380 = vsel %vm1374, %v1373, 0.0
  %v1381 = vadd.f32 %v1379, %v1380
  %1382 = vadd.xlane.f32.xlu0 %v1381
  %v1383 = vpop.xlane.xlu0 %1382
  %v1384 = vadd.f32 %v1383, 1e-12
  %v1385 = vrsqrt.pop %v1384
  %v1386 = vmul.f32 %v1323, %v1385
  %v1387 = vmul.f32 %v1325, %v1385
  %v1388 = vmul.f32 %v1364, %v1385
  %v1389 = vmul.f32 %v1366, %v1385
  %v1390 = vpack.c.bf16 %v926, %v926
  %v1391 = vpack.c.bf16 %v927, %v927
  %v1392 = vpack.c.bf16 %v928, %v928
  %v1393 = vpack.c.bf16 %v929, %v929
  %v1394 = vpack.c.bf16 %v1386, %v1386
  %v1395 = vpack.c.bf16 %v1387, %v1387
  %v1396 = vpack.c.bf16 %v1388, %v1388
  %v1397 = vpack.c.bf16 %v1389, %v1389
  %1398 = vmatprep.subr.bf16.mxu0 0
  %1399 = vmatpush1.bf16.xpose.msra.mxu0 0
  %1400 = vmatprep.subr.bf16.mxu0 0
  %1401 = vmatpush1.bf16.xpose.msra.mxu0 0
  %1402 = vmatprep.subr.bf16.mxu0 0
  %1403 = vmatpush1.bf16.xpose.msra.mxu0 0
  %1404 = vmatprep.subr.bf16.mxu0 0
  %1405 = vmatpush1.bf16.xpose.msra.mxu0 0
  %1406 = vmatprep.subr.bf16.mxu0 0
  %1407 = vmatpush1.bf16.xpose.msra.mxu0 0
  %1408 = vmatprep.subr.bf16.mxu0 0
  %1409 = vmatpush1.bf16.xpose.msra.mxu0 0
  %1410 = vmatprep.subr.bf16.mxu0 0
  %1411 = vmatpush1.bf16.xpose.msra.mxu0 0
  %1412 = vmatprep.subr.bf16.mxu0 %v1395
  %1413 = vmatpush1.bf16.xpose.msra.mxu0 %v1394
  %1414 = vmatprep.subr.bf16.mxu0 0
  %1415 = vmatpush2.bf16.xpose.msra.mxu0 0
  %1416 = vmatprep.subr.bf16.mxu0 0
  %1417 = vmatpush2.bf16.xpose.msra.mxu0 0
  %1418 = vmatprep.subr.bf16.mxu0 0
  %1419 = vmatpush2.bf16.xpose.msra.mxu0 0
  %1420 = vmatprep.subr.bf16.mxu0 0
  %1421 = vmatpush2.bf16.xpose.msra.mxu0 0
  %1422 = vmatprep.subr.bf16.mxu0 0
  %1423 = vmatpush2.bf16.xpose.msra.mxu0 0
  %1424 = vmatprep.subr.bf16.mxu0 0
  %1425 = vmatpush2.bf16.xpose.msra.mxu0 0
  %1426 = vmatprep.subr.bf16.mxu0 0
  %1427 = vmatpush2.bf16.xpose.msra.mxu0 0
  %1428 = vmatprep.subr.bf16.mxu0 0
  %1429 = vmatpush2.bf16.xpose.msra.mxu0 0
  %1430 = vmatprep.mubr.bf16.mxu0 %v1391
  %1431 = vmatmul.mubr.bf16.gmra.mxu0 %v1390
  %v1432 = vpop.f32.mrf.mxu0
  %v1433 = vadd.f32 0.0, %v1432
  %v1434 = vpop.f32.mrf.mxu0
  %v1435 = vpop.f32.mrf.mxu0
  %v1436 = vpop.f32.mrf.mxu0
  %1437 = vdwg.mxu0
  %1438 = vmatprep.subr.bf16.mxu0 0
  %1439 = vmatpush1.bf16.xpose.msra.mxu0 0
  %1440 = vmatprep.subr.bf16.mxu0 0
  %1441 = vmatpush1.bf16.xpose.msra.mxu0 0
  %1442 = vmatprep.subr.bf16.mxu0 0
  %1443 = vmatpush1.bf16.xpose.msra.mxu0 0
  %1444 = vmatprep.subr.bf16.mxu0 0
  %1445 = vmatpush1.bf16.xpose.msra.mxu0 0
  %1446 = vmatprep.subr.bf16.mxu0 0
  %1447 = vmatpush1.bf16.xpose.msra.mxu0 0
  %1448 = vmatprep.subr.bf16.mxu0 0
  %1449 = vmatpush1.bf16.xpose.msra.mxu0 0
  %1450 = vmatprep.subr.bf16.mxu0 0
  %1451 = vmatpush1.bf16.xpose.msra.mxu0 0
  %1452 = vmatprep.subr.bf16.mxu0 %v1397
  %1453 = vmatpush1.bf16.xpose.msra.mxu0 %v1396
  %1454 = vmatprep.subr.bf16.mxu0 0
  %1455 = vmatpush2.bf16.xpose.msra.mxu0 0
  %1456 = vmatprep.subr.bf16.mxu0 0
  %1457 = vmatpush2.bf16.xpose.msra.mxu0 0
  %1458 = vmatprep.subr.bf16.mxu0 0
  %1459 = vmatpush2.bf16.xpose.msra.mxu0 0
  %1460 = vmatprep.subr.bf16.mxu0 0
  %1461 = vmatpush2.bf16.xpose.msra.mxu0 0
  %1462 = vmatprep.subr.bf16.mxu0 0
  %1463 = vmatpush2.bf16.xpose.msra.mxu0 0
  %1464 = vmatprep.subr.bf16.mxu0 0
  %1465 = vmatpush2.bf16.xpose.msra.mxu0 0
  %1466 = vmatprep.subr.bf16.mxu0 0
  %1467 = vmatpush2.bf16.xpose.msra.mxu0 0
  %1468 = vmatprep.subr.bf16.mxu0 0
  %1469 = vmatpush2.bf16.xpose.msra.mxu0 0
  %1470 = vmatprep.mubr.bf16.mxu0 %v1393
  %1471 = vmatmul.mubr.bf16.gmra.mxu0 %v1392
  %v1472 = vpop.f32.mrf.mxu0
  %v1473 = vadd.f32 %v1433, %v1472
  %v1474 = vpop.f32.mrf.mxu0
  %v1475 = vpop.f32.mrf.mxu0
  %v1476 = vpop.f32.mrf.mxu0
  %1477 = vdwg.mxu0
  %vm1478 = vcmask 25600
  %1479 = vst.msk [vmem:[%s10] sm:$0x3] %vm1478, %v1473
  // Predicated region
  $region38: #{hybrid_model_forward.1} parent=0 // pred_check
    _
  $region39: #{hybrid_model_forward.1} parent=0 // pred_check_branch
    %1481 = sbr.rel (0) target = $region41
  $region40: #{hybrid_model_forward.1} parent=0 // pred_region
    _
  $region41: #{hybrid_model_forward.1} parent=0 // pred_fallthru
    _
  // Predicated region
  $region42: #{hybrid_model_forward.1} parent=0 // pred_check
    _
  $region43: #{hybrid_model_forward.1} parent=0 // pred_check_branch
    %1483 = sbr.rel (0) target = $region45
  $region44: #{hybrid_model_forward.1} parent=0 // pred_region
    _
  $region45: #{hybrid_model_forward.1} parent=0 // pred_fallthru
    _

</llo_original>
